<compile_context>
chip_gen: v5e
topology: v5e:2x2
jax: 0.10.0
libtpu: 0.0.40
codegen_flags: <defaults>
</compile_context>

<pallas_src>
import functools

import jax
import jax.numpy as jnp
import numpy as np
from jax.experimental import pallas as pl
from jax.experimental.pallas import tpu as pltpu

_HIDDEN = 256


def actor_kernel(x_ref, w1_ref, b1_ref, w2_ref, b2_ref, w3_ref, b3_ref,
                 scale_ref, bias_ref, o_ref):
    # fc1 + ReLU  (cast x to the weight dtype in-kernel; f32 accumulation)
    x = x_ref[...].astype(w1_ref.dtype)
    h1 = jnp.dot(x, w1_ref[...], preferred_element_type=jnp.float32)
    h1 = jnp.maximum(h1 + b1_ref[...], 0.0)
    # fc2 + ReLU
    h2 = jnp.dot(h1.astype(w2_ref.dtype), w2_ref[...],
                 preferred_element_type=jnp.float32)
    h2 = jnp.maximum(h2 + b2_ref[...], 0.0)
    # fc_mu + tanh (EUP), fused affine rescale, all f32 elementwise
    mu = jnp.dot(h2.astype(w3_ref.dtype), w3_ref[...],
                 preferred_element_type=jnp.float32)
    mu = jnp.tanh(mu + b3_ref[...])
    o_ref[...] = mu * scale_ref[...] + bias_ref[...]


def _round_up(x, m):
    return ((x + m - 1) // m) * m


def _choose_tb(B, batch_tile):
    """Pick the batch tile.  Defaults to 1 step for B<=512, else ~2 balanced
    steps (one per v7x TensorCore), capped at 1024 rows per tile."""
    if batch_tile is None:
        if B <= 512:
            return B
        batch_tile = min(1024, _round_up(pl.cdiv(B, 2), 8))
    if batch_tile >= B:
        return B
    return _round_up(batch_tile, 8)


def actor_forward(x, params, *, batch_tile=None):
    """x: (B, dim_obs) f32.  params: output of init_actor_params (optionally
    passed through prepare_actor_params for bf16 matmul operands).

    Does NO per-call weight transformation: only x flows through the wrapper.
    """
    B, dim_obs = x.shape
    w1, b1 = params["w1"], params["b1"]
    w2, b2 = params["w2"], params["b2"]
    w3, b3 = params["w3"], params["b3"]
    scale, bias = params["action_scale"], params["action_bias"]
    hidden = w1.shape[1]
    dim_action = w3.shape[1]

    tb = _choose_tb(B, batch_tile)
    grid = (pl.cdiv(B, tb),)

    weight_bytes = sum(
        int(np.prod(a.shape)) * a.dtype.itemsize
        for a in (w1, b1, w2, b2, w3, b3, scale, bias))
    cost = pl.CostEstimate(
        flops=2 * B * (dim_obs * hidden + hidden * hidden + hidden * dim_action),
        transcendentals=B * dim_action,
        bytes_accessed=int(x.size) * x.dtype.itemsize
        + weight_bytes + B * dim_action * 4,
    )

    return pl.pallas_call(
        actor_kernel,
        out_shape=jax.ShapeDtypeStruct((B, dim_action), jnp.float32),
        grid_spec=pltpu.PrefetchScalarGridSpec(
            num_scalar_prefetch=0,
            grid=grid,
            in_specs=[
                # x: streamed over the batch axis (double-buffered pipeline)
                pl.BlockSpec((tb, dim_obs), lambda i: (i, 0)),
                # weights / biases / scale / bias: full arrays with a constant
                # block index -> DMAed once, held resident across grid steps.
                pl.BlockSpec((dim_obs, hidden), lambda i: (0, 0)),
                pl.BlockSpec((1, hidden), lambda i: (0, 0)),
                pl.BlockSpec((hidden, hidden), lambda i: (0, 0)),
                pl.BlockSpec((1, hidden), lambda i: (0, 0)),
                pl.BlockSpec((hidden, dim_action), lambda i: (0, 0)),
                pl.BlockSpec((1, dim_action), lambda i: (0, 0)),
                pl.BlockSpec((1, dim_action), lambda i: (0, 0)),
                pl.BlockSpec((1, dim_action), lambda i: (0, 0)),
            ],
            # Real (unpadded) action width: block dims equal full array dims,
            # so the narrow store is legal; saves 32x HBM writeback + a slice.
            out_specs=pl.BlockSpec((tb, dim_action), lambda i: (i, 0)),
        ),
        compiler_params=pltpu.CompilerParams(
            dimension_semantics=("parallel",)),
        cost_estimate=cost,
    )(x, w1, b1, w2, b2, w3, b3, scale, bias)


def prepare_actor_params(params, *, use_bf16=True):
    """One-time weight preparation (hoisted out of the per-call path).

    Casts the matmul weight matrices to bf16 (MXU operands); biases, scale and
    bias stay f32 so all elementwise math stays f32.  Works on v5e/v6e/v7x."""
    p = dict(params)
    if use_bf16:
        for k in ("w1", "w2", "w3"):
            p[k] = p[k].astype(jnp.bfloat16)
    return p


def init_actor_params(key, dim_action, dim_observation, action_bounds):
    """Deterministic synthetic parameters matching the PyTorch module's shapes."""
    hidden = _HIDDEN
    k1, k2, k3, k4, k5, k6 = jax.random.split(key, 6)

    def linear(kw, kb, fan_in, fan_out):
        lim = 1.0 / np.sqrt(fan_in)
        w = jax.random.uniform(kw, (fan_in, fan_out), jnp.float32, -lim, lim)
        b = jax.random.uniform(kb, (1, fan_out), jnp.float32, -lim, lim)
        return w, b

    w1, b1 = linear(k1, k2, dim_observation, hidden)
    w2, b2 = linear(k3, k4, hidden, hidden)
    w3, b3 = linear(k5, k6, hidden, dim_action)

    action_scale = ((action_bounds[:, 1] - action_bounds[:, 0]) / 2.0).astype(np.float32)
    action_bias = ((action_bounds[:, 1] + action_bounds[:, 0]) / 2.0).astype(np.float32)

    return {
        "w1": w1, "b1": b1,
        "w2": w2, "b2": b2,
        "w3": w3, "b3": b3,
        "action_scale": jnp.asarray(action_scale).reshape(1, dim_action),
        "action_bias": jnp.asarray(action_bias).reshape(1, dim_action),
    }


def actor_reference(x, params):
    h1 = jnp.maximum(x @ params["w1"] + params["b1"], 0.0)
    h2 = jnp.maximum(h1 @ params["w2"] + params["b2"], 0.0)
    mu = jnp.tanh(h2 @ params["w3"] + params["b3"])
    return mu * params["action_scale"] + params["action_bias"]


if __name__ == "__main__":
    dim_observation = 16
    dim_action = 4

    # deterministic asymmetric action bounds, e.g. [[-2, 2], [-1, 3], ...]
    action_bounds = np.stack(
        [np.arange(dim_action, dtype=np.float32) - 2.0,
         np.arange(dim_action, dtype=np.float32) + 2.0], axis=1)

    key = jax.random.PRNGKey(0)
    kx, kp = jax.random.split(key)
    params_f32 = init_actor_params(kp, dim_action, dim_observation, action_bounds)
    params_bf16 = prepare_actor_params(params_f32, use_bf16=True)  # one-time prep

    fwd = jax.jit(actor_forward, static_argnames=("batch_tile",))

    batch = 256
    x = jax.random.normal(kx, (batch, dim_observation), dtype=jnp.float32)
    ref = actor_reference(x, params_f32)

    # --- case 1: f32 weights, single grid step, tight tolerance --------------
    out_f32 = jax.block_until_ready(fwd(x, params_f32))
    np.testing.assert_allclose(np.asarray(out_f32), np.asarray(ref),
                               rtol=1e-5, atol=1e-5)

    # --- case 2: bf16 weights (default production path), loose tolerance -----
    out_bf16 = jax.block_until_ready(fwd(x, params_bf16))
    np.testing.assert_allclose(np.asarray(out_bf16), np.asarray(ref),
                               rtol=5e-2, atol=5e-2)

    # --- case 3: ragged batch (B=200, tb=128 -> 2 steps, masked last store) ---
    x_ragged = x[:200]
    out_ragged = jax.block_until_ready(fwd(x_ragged, params_f32, batch_tile=128))
    np.testing.assert_allclose(np.asarray(out_ragged), np.asarray(ref[:200]),
                               rtol=1e-5, atol=1e-5)

    # --- case 4: tiny batch -> single-step grid -------------------------------
    out_small = jax.block_until_ready(fwd(x[:8], params_bf16))
    np.testing.assert_allclose(np.asarray(out_small), np.asarray(ref[:8]),
                               rtol=5e-2, atol=5e-2)

    print("KERNEL_OK")
</pallas_src>

<mosaic_0001>
module attributes {stable_mosaic.version = 11 : i64} {
  func.func @actor_kernel(%arg0: i32, %arg1: memref<256x16xf32, #tpu.memory_space<vmem>>, %arg2: memref<16x256xf32, #tpu.memory_space<vmem>>, %arg3: memref<1x256xf32, #tpu.memory_space<vmem>>, %arg4: memref<256x256xf32, #tpu.memory_space<vmem>>, %arg5: memref<1x256xf32, #tpu.memory_space<vmem>>, %arg6: memref<256x4xf32, #tpu.memory_space<vmem>>, %arg7: memref<1x4xf32, #tpu.memory_space<vmem>>, %arg8: memref<1x4xf32, #tpu.memory_space<vmem>>, %arg9: memref<1x4xf32, #tpu.memory_space<vmem>>, %arg10: memref<256x4xf32, #tpu.memory_space<vmem>>) attributes {dimension_semantics = [#tpu.dimension_semantics<parallel>], iteration_bounds = array<i64: 1>, scalar_prefetch = 0 : i64, scratch_operands = 0 : i64, tpu.core_type = #tpu.core_type<tc>, window_params = [{transform_indices = @transform_0, window_bounds = array<i64: 256, 16>}, {pipeline_mode = #tpu.pipeline_mode<synchronous>, transform_indices = @transform_1, window_bounds = array<i64: 16, 256>}, {pipeline_mode = #tpu.pipeline_mode<synchronous>, transform_indices = @transform_2, window_bounds = array<i64: 1, 256>}, {pipeline_mode = #tpu.pipeline_mode<synchronous>, transform_indices = @transform_3, window_bounds = array<i64: 256, 256>}, {pipeline_mode = #tpu.pipeline_mode<synchronous>, transform_indices = @transform_4, window_bounds = array<i64: 1, 256>}, {pipeline_mode = #tpu.pipeline_mode<synchronous>, transform_indices = @transform_5, window_bounds = array<i64: 256, 4>}, {pipeline_mode = #tpu.pipeline_mode<synchronous>, transform_indices = @transform_6, window_bounds = array<i64: 1, 4>}, {pipeline_mode = #tpu.pipeline_mode<synchronous>, transform_indices = @transform_7, window_bounds = array<i64: 1, 4>}, {pipeline_mode = #tpu.pipeline_mode<synchronous>, transform_indices = @transform_8, window_bounds = array<i64: 1, 4>}, {transform_indices = @transform_9, window_bounds = array<i64: 256, 4>}]} {
    %c0 = arith.constant 0 : index
    %c0_0 = arith.constant 0 : index
    %0 = vector.load %arg1[%c0, %c0_0] : memref<256x16xf32, #tpu.memory_space<vmem>>, vector<256x16xf32>
    %c0_1 = arith.constant 0 : index
    %c0_2 = arith.constant 0 : index
    %1 = vector.load %arg2[%c0_1, %c0_2] : memref<16x256xf32, #tpu.memory_space<vmem>>, vector<16x256xf32>
    %cst = arith.constant dense<0.000000e+00> : vector<256x256xf32>
    %2 = tpu.matmul %0, %1, %cst {dimension_numbers = #tpu.dot_dimension_numbers<[1], [0], [0], [1], [0, 0, 1, 1], [], []>} : vector<256x16xf32>, vector<16x256xf32>, vector<256x256xf32> -> vector<256x256xf32>
    %c0_3 = arith.constant 0 : index
    %c0_4 = arith.constant 0 : index
    %3 = vector.load %arg3[%c0_3, %c0_4] : memref<1x256xf32, #tpu.memory_space<vmem>>, vector<1x256xf32>
    %4 = vector.broadcast %3 : vector<1x256xf32> to vector<256x256xf32>
    %5 = arith.addf %2, %4 : vector<256x256xf32>
    %cst_5 = arith.constant 0.000000e+00 : f32
    %6 = vector.broadcast %cst_5 : f32 to vector<256x256xf32>
    %7 = arith.maximumf %5, %6 : vector<256x256xf32>
    %c0_6 = arith.constant 0 : index
    %c0_7 = arith.constant 0 : index
    %8 = vector.load %arg4[%c0_6, %c0_7] : memref<256x256xf32, #tpu.memory_space<vmem>>, vector<256x256xf32>
    %cst_8 = arith.constant dense<0.000000e+00> : vector<256x256xf32>
    %9 = tpu.matmul %7, %8, %cst_8 {dimension_numbers = #tpu.dot_dimension_numbers<[1], [0], [0], [1], [0, 0, 1, 1], [], []>} : vector<256x256xf32>, vector<256x256xf32>, vector<256x256xf32> -> vector<256x256xf32>
    %c0_9 = arith.constant 0 : index
    %c0_10 = arith.constant 0 : index
    %10 = vector.load %arg5[%c0_9, %c0_10] : memref<1x256xf32, #tpu.memory_space<vmem>>, vector<1x256xf32>
    %11 = vector.broadcast %10 : vector<1x256xf32> to vector<256x256xf32>
    %12 = arith.addf %9, %11 : vector<256x256xf32>
    %cst_11 = arith.constant 0.000000e+00 : f32
    %13 = vector.broadcast %cst_11 : f32 to vector<256x256xf32>
    %14 = arith.maximumf %12, %13 : vector<256x256xf32>
    %c0_12 = arith.constant 0 : index
    %c0_13 = arith.constant 0 : index
    %15 = vector.load %arg6[%c0_12, %c0_13] : memref<256x4xf32, #tpu.memory_space<vmem>>, vector<256x4xf32>
    %cst_14 = arith.constant dense<0.000000e+00> : vector<256x4xf32>
    %16 = tpu.matmul %14, %15, %cst_14 {dimension_numbers = #tpu.dot_dimension_numbers<[1], [0], [0], [1], [0, 0, 1, 1], [], []>} : vector<256x256xf32>, vector<256x4xf32>, vector<256x4xf32> -> vector<256x4xf32>
    %c0_15 = arith.constant 0 : index
    %c0_16 = arith.constant 0 : index
    %17 = vector.load %arg7[%c0_15, %c0_16] : memref<1x4xf32, #tpu.memory_space<vmem>>, vector<1x4xf32>
    %18 = vector.broadcast %17 : vector<1x4xf32> to vector<256x4xf32>
    %19 = arith.addf %16, %18 : vector<256x4xf32>
    %20 = math.tanh %19 : vector<256x4xf32>
    %c0_17 = arith.constant 0 : index
    %c0_18 = arith.constant 0 : index
    %21 = vector.load %arg8[%c0_17, %c0_18] : memref<1x4xf32, #tpu.memory_space<vmem>>, vector<1x4xf32>
    %22 = vector.broadcast %21 : vector<1x4xf32> to vector<256x4xf32>
    %23 = arith.mulf %20, %22 : vector<256x4xf32>
    %c0_19 = arith.constant 0 : index
    %c0_20 = arith.constant 0 : index
    %24 = vector.load %arg9[%c0_19, %c0_20] : memref<1x4xf32, #tpu.memory_space<vmem>>, vector<1x4xf32>
    %25 = vector.broadcast %24 : vector<1x4xf32> to vector<256x4xf32>
    %26 = arith.addf %23, %25 : vector<256x4xf32>
    %c0_21 = arith.constant 0 : index
    %c0_22 = arith.constant 0 : index
    %27 = vector.load %arg10[%c0_21, %c0_22] : memref<256x4xf32, #tpu.memory_space<vmem>>, vector<256x4xf32>
    tpu.vector_store %arg10[%c0_21, %c0_22], %26 {strides = array<i32>} : memref<256x4xf32, #tpu.memory_space<vmem>>, vector<256x4xf32>,
    return
  }
  func.func @transform_0(%arg0: i32) -> (i32, i32) {
    %c0_i32 = arith.constant 0 : i32
    %c0_i32_0 = arith.constant 0 : i32
    return %arg0, %c0_i32 : i32, i32
  }
  func.func @transform_1(%arg0: i32) -> (i32, i32) {
    %c0_i32 = arith.constant 0 : i32
    %c0_i32_0 = arith.constant 0 : i32
    %c0_i32_1 = arith.constant 0 : i32
    return %c0_i32, %c0_i32_0 : i32, i32
  }
  func.func @transform_2(%arg0: i32) -> (i32, i32) {
    %c0_i32 = arith.constant 0 : i32
    %c0_i32_0 = arith.constant 0 : i32
    %c0_i32_1 = arith.constant 0 : i32
    return %c0_i32, %c0_i32_0 : i32, i32
  }
  func.func @transform_3(%arg0: i32) -> (i32, i32) {
    %c0_i32 = arith.constant 0 : i32
    %c0_i32_0 = arith.constant 0 : i32
    %c0_i32_1 = arith.constant 0 : i32
    return %c0_i32, %c0_i32_0 : i32, i32
  }
  func.func @transform_4(%arg0: i32) -> (i32, i32) {
    %c0_i32 = arith.constant 0 : i32
    %c0_i32_0 = arith.constant 0 : i32
    %c0_i32_1 = arith.constant 0 : i32
    return %c0_i32, %c0_i32_0 : i32, i32
  }
  func.func @transform_5(%arg0: i32) -> (i32, i32) {
    %c0_i32 = arith.constant 0 : i32
    %c0_i32_0 = arith.constant 0 : i32
    %c0_i32_1 = arith.constant 0 : i32
    return %c0_i32, %c0_i32_0 : i32, i32
  }
  func.func @transform_6(%arg0: i32) -> (i32, i32) {
    %c0_i32 = arith.constant 0 : i32
    %c0_i32_0 = arith.constant 0 : i32
    %c0_i32_1 = arith.constant 0 : i32
    return %c0_i32, %c0_i32_0 : i32, i32
  }
  func.func @transform_7(%arg0: i32) -> (i32, i32) {
    %c0_i32 = arith.constant 0 : i32
    %c0_i32_0 = arith.constant 0 : i32
    %c0_i32_1 = arith.constant 0 : i32
    return %c0_i32, %c0_i32_0 : i32, i32
  }
  func.func @transform_8(%arg0: i32) -> (i32, i32) {
    %c0_i32 = arith.constant 0 : i32
    %c0_i32_0 = arith.constant 0 : i32
    %c0_i32_1 = arith.constant 0 : i32
    return %c0_i32, %c0_i32_0 : i32, i32
  }
  func.func @transform_9(%arg0: i32) -> (i32, i32) {
    %c0_i32 = arith.constant 0 : i32
    %c0_i32_0 = arith.constant 0 : i32
    return %arg0, %c0_i32 : i32, i32
  }
}

</mosaic_0001>

<llo_original>
// kernel: actor_forward.1
$region0: #{actor_forward.1}
  #allocation0 [shape = 'u32[]', space=smem, size = 0x4, offset = 0x4, fixed_abs, tag = 'smem constant byte address 0x4 - core index']
  #allocation1 [shape = 'u32[72,128]{1,0:T(1,128)}', space=vmem, size = 0x9000, scoped, tag = 'internal scratch']
  %s0 = inlined_call_operand.vmem [shape: f32[256,16], index: 0, kind: input, shape index: {}]
  %s1 = inlined_call_operand.vmem [shape: f32[16,256], index: 1, kind: input, shape index: {}]
  %s2 = inlined_call_operand.vmem [shape: f32[1,256], index: 2, kind: input, shape index: {}]
  %s3 = inlined_call_operand.vmem [shape: f32[256,256], index: 3, kind: input, shape index: {}]
  %s4 = inlined_call_operand.vmem [shape: f32[1,256], index: 4, kind: input, shape index: {}]
  %s5 = inlined_call_operand.vmem [shape: f32[256,4], index: 5, kind: input, shape index: {}]
  %s6 = inlined_call_operand.vmem [shape: f32[1,4], index: 6, kind: input, shape index: {}]
  %s7 = inlined_call_operand.vmem [shape: f32[1,4], index: 7, kind: input, shape index: {}]
  %s8 = inlined_call_operand.vmem [shape: f32[1,4], index: 8, kind: input, shape index: {}]
  %s9 = inlined_call_operand.vmem [shape: f32[256,4], index: 9, kind: output, shape index: {}]
  %s10 = sld [smem:[#allocation0]]
  $region46: #{actor_forward.1} parent=0
    _
  %s12 = ssub.s32 1, %s10
  %s13 = scalar_select 0, %s12, %s10
  // Predicated region
  $region2: #{actor_forward.1} parent=0 // pred_check
    _
  $region3: #{actor_forward.1} parent=0 // pred_check_branch
    %15 = sbr.rel (0) target = $region5
  $region4: #{actor_forward.1} parent=0 // pred_region
    _
  $region5: #{actor_forward.1} parent=0 // pred_fallthru
    _
  // Predicated region
  $region6: #{actor_forward.1} parent=0 // pred_check
    _
  $region7: #{actor_forward.1} parent=0 // pred_check_branch
    %17 = sbr.rel (0) target = $region9
  $region8: #{actor_forward.1} parent=0 // pred_region
    _
  $region9: #{actor_forward.1} parent=0 // pred_fallthru
    _
  // Predicated region
  $region10: #{actor_forward.1} parent=0 // pred_check
    _
  $region11: #{actor_forward.1} parent=0 // pred_check_branch
    %19 = sbr.rel (0) target = $region13
  $region12: #{actor_forward.1} parent=0 // pred_region
    _
  $region13: #{actor_forward.1} parent=0 // pred_fallthru
    _
  // Predicated region
  $region14: #{actor_forward.1} parent=0 // pred_check
    _
  $region15: #{actor_forward.1} parent=0 // pred_check_branch
    %21 = sbr.rel (0) target = $region17
  $region16: #{actor_forward.1} parent=0 // pred_region
    _
  $region17: #{actor_forward.1} parent=0 // pred_fallthru
    _
  // Predicated region
  $region18: #{actor_forward.1} parent=0 // pred_check
    _
  $region19: #{actor_forward.1} parent=0 // pred_check_branch
    %23 = sbr.rel (0) target = $region21
  $region20: #{actor_forward.1} parent=0 // pred_region
    _
  $region21: #{actor_forward.1} parent=0 // pred_fallthru
    _
  // Predicated region
  $region22: #{actor_forward.1} parent=0 // pred_check
    _
  $region23: #{actor_forward.1} parent=0 // pred_check_branch
    %25 = sbr.rel (0) target = $region25
  $region24: #{actor_forward.1} parent=0 // pred_region
    _
  $region25: #{actor_forward.1} parent=0 // pred_fallthru
    _
  // Predicated region
  $region26: #{actor_forward.1} parent=0 // pred_check
    _
  $region27: #{actor_forward.1} parent=0 // pred_check_branch
    %27 = sbr.rel (0) target = $region29
  $region28: #{actor_forward.1} parent=0 // pred_region
    _
  $region29: #{actor_forward.1} parent=0 // pred_fallthru
    _
  // Predicated region
  $region30: #{actor_forward.1} parent=0 // pred_check
    _
  $region31: #{actor_forward.1} parent=0 // pred_check_branch
    %29 = sbr.rel (0) target = $region33
  $region32: #{actor_forward.1} parent=0 // pred_region
    _
  $region33: #{actor_forward.1} parent=0 // pred_fallthru
    _
  // Predicated region
  $region34: #{actor_forward.1} parent=0 // pred_check
    _
  $region35: #{actor_forward.1} parent=0 // pred_check_branch
    %31 = sbr.rel (0) target = $region37
  $region36: #{actor_forward.1} parent=0 // pred_region
    _
  $region37: #{actor_forward.1} parent=0 // pred_fallthru
    _
  %v32 = vld [vmem:[%s0] sm:$0xff]
  %v33 = vld [vmem:[%s0 + $0x8] sm:$0xff]
  %v34 = vld [vmem:[%s0 + $0x10] sm:$0xff]
  %v35 = vld [vmem:[%s0 + $0x18] sm:$0xff]
  %v36 = vld [vmem:[%s0 + $0x20] sm:$0xff]
  %v37 = vld [vmem:[%s0 + $0x28] sm:$0xff]
  %v38 = vld [vmem:[%s0 + $0x30] sm:$0xff]
  %v39 = vld [vmem:[%s0 + $0x38] sm:$0xff]
  %v40 = vld [vmem:[%s0 + $0x40] sm:$0xff]
  %v41 = vld [vmem:[%s0 + $0x48] sm:$0xff]
  %v42 = vld [vmem:[%s0 + $0x50] sm:$0xff]
  %v43 = vld [vmem:[%s0 + $0x58] sm:$0xff]
  %v44 = vld [vmem:[%s0 + $0x60] sm:$0xff]
  %v45 = vld [vmem:[%s0 + $0x68] sm:$0xff]
  %v46 = vld [vmem:[%s0 + $0x70] sm:$0xff]
  %v47 = vld [vmem:[%s0 + $0x78] sm:$0xff]
  %v48 = vld [vmem:[%s0 + $0x80] sm:$0xff]
  %v49 = vld [vmem:[%s0 + $0x88] sm:$0xff]
  %v50 = vld [vmem:[%s0 + $0x90] sm:$0xff]
  %v51 = vld [vmem:[%s0 + $0x98] sm:$0xff]
  %v52 = vld [vmem:[%s0 + $0xa0] sm:$0xff]
  %v53 = vld [vmem:[%s0 + $0xa8] sm:$0xff]
  %v54 = vld [vmem:[%s0 + $0xb0] sm:$0xff]
  %v55 = vld [vmem:[%s0 + $0xb8] sm:$0xff]
  %v56 = vld [vmem:[%s0 + $0xc0] sm:$0xff]
  %v57 = vld [vmem:[%s0 + $0xc8] sm:$0xff]
  %v58 = vld [vmem:[%s0 + $0xd0] sm:$0xff]
  %v59 = vld [vmem:[%s0 + $0xd8] sm:$0xff]
  %v60 = vld [vmem:[%s0 + $0xe0] sm:$0xff]
  %v61 = vld [vmem:[%s0 + $0xe8] sm:$0xff]
  %v62 = vld [vmem:[%s0 + $0xf0] sm:$0xff]
  %v63 = vld [vmem:[%s0 + $0xf8] sm:$0xff]
  %v64 = vld [vmem:[%s1] sm:$0xff]
  %v65 = vld [vmem:[%s1 + $0x8] sm:$0xff]
  %v66 = vld [vmem:[%s1 + $0x10] sm:$0xff]
  %v67 = vld [vmem:[%s1 + $0x18] sm:$0xff]
  %v68 = vld [vmem:[%s2] sm:$0x3]
  %v70 = vperm.slane %v68, 0
  %v71 = vperm.slane %v68, 1
  %vm74 = vcmask 130048
  %v76 = vsel %vm74, %v32, 0
  %v79 = vsel %vm74, %v33, 0
  %v82 = vsel %vm74, %v34, 0
  %v85 = vsel %vm74, %v35, 0
  %v88 = vsel %vm74, %v36, 0
  %v91 = vsel %vm74, %v37, 0
  %v94 = vsel %vm74, %v38, 0
  %v97 = vsel %vm74, %v39, 0
  %v100 = vsel %vm74, %v40, 0
  %v103 = vsel %vm74, %v41, 0
  %v106 = vsel %vm74, %v42, 0
  %v109 = vsel %vm74, %v43, 0
  %v112 = vsel %vm74, %v44, 0
  %v115 = vsel %vm74, %v45, 0
  %v118 = vsel %vm74, %v46, 0
  %v121 = vsel %vm74, %v47, 0
  %v124 = vsel %vm74, %v48, 0
  %v127 = vsel %vm74, %v49, 0
  %v130 = vsel %vm74, %v50, 0
  %v133 = vsel %vm74, %v51, 0
  %v136 = vsel %vm74, %v52, 0
  %v139 = vsel %vm74, %v53, 0
  %v142 = vsel %vm74, %v54, 0
  %v145 = vsel %vm74, %v55, 0
  %v148 = vsel %vm74, %v56, 0
  %v151 = vsel %vm74, %v57, 0
  %v154 = vsel %vm74, %v58, 0
  %v157 = vsel %vm74, %v59, 0
  %v160 = vsel %vm74, %v60, 0
  %v163 = vsel %vm74, %v61, 0
  %v166 = vsel %vm74, %v62, 0
  %v169 = vsel %vm74, %v63, 0
  %171 = vmatpush.msra.mxu0 0.0
  %172 = vmatpush.msra.mxu0 0.0
  %173 = vmatpush.msra.mxu0 0.0
  %174 = vmatpush.msra.mxu0 0.0
  %175 = vmatpush.msra.mxu0 0.0
  %176 = vmatpush.msra.mxu0 0.0
  %177 = vmatpush.msra.mxu0 0.0
  %178 = vmatpush.msra.mxu0 0.0
  %179 = vmatpush.msra.mxu0 0.0
  %180 = vmatpush.msra.mxu0 0.0
  %181 = vmatpush.msra.mxu0 0.0
  %182 = vmatpush.msra.mxu0 0.0
  %183 = vmatpush.msra.mxu0 0.0
  %184 = vmatpush.msra.mxu0 0.0
  %185 = vmatpush.msra.mxu0 %v66
  %186 = vmatpush.msra.mxu0 %v64
  %187 = vmatmul.f32.gmra.mxu0 %v76
  %v188 = vpop.f32.mrf.mxu0
  %v189 = vadd.f32 %v70, %v188
  %190 = vmatmul.f32.gmra.mxu0 %v79
  %v191 = vpop.f32.mrf.mxu0
  %v192 = vadd.f32 %v70, %v191
  %193 = vmatmul.f32.gmra.mxu0 %v82
  %v194 = vpop.f32.mrf.mxu0
  %v195 = vadd.f32 %v70, %v194
  %196 = vmatmul.f32.gmra.mxu0 %v85
  %v197 = vpop.f32.mrf.mxu0
  %v198 = vadd.f32 %v70, %v197
  %199 = vmatmul.f32.gmra.mxu0 %v88
  %v200 = vpop.f32.mrf.mxu0
  %v201 = vadd.f32 %v70, %v200
  %202 = vmatmul.f32.gmra.mxu0 %v91
  %v203 = vpop.f32.mrf.mxu0
  %v204 = vadd.f32 %v70, %v203
  %205 = vmatmul.f32.gmra.mxu0 %v94
  %v206 = vpop.f32.mrf.mxu0
  %v207 = vadd.f32 %v70, %v206
  %208 = vmatmul.f32.gmra.mxu0 %v97
  %v209 = vpop.f32.mrf.mxu0
  %v210 = vadd.f32 %v70, %v209
  %211 = vmatmul.f32.gmra.mxu0 %v100
  %v212 = vpop.f32.mrf.mxu0
  %v213 = vadd.f32 %v70, %v212
  %214 = vmatmul.f32.gmra.mxu0 %v103
  %v215 = vpop.f32.mrf.mxu0
  %v216 = vadd.f32 %v70, %v215
  %217 = vmatmul.f32.gmra.mxu0 %v106
  %v218 = vpop.f32.mrf.mxu0
  %v219 = vadd.f32 %v70, %v218
  %220 = vmatmul.f32.gmra.mxu0 %v109
  %v221 = vpop.f32.mrf.mxu0
  %v222 = vadd.f32 %v70, %v221
  %223 = vmatmul.f32.gmra.mxu0 %v112
  %v224 = vpop.f32.mrf.mxu0
  %v225 = vadd.f32 %v70, %v224
  %226 = vmatmul.f32.gmra.mxu0 %v115
  %v227 = vpop.f32.mrf.mxu0
  %v228 = vadd.f32 %v70, %v227
  %229 = vmatmul.f32.gmra.mxu0 %v118
  %v230 = vpop.f32.mrf.mxu0
  %v231 = vadd.f32 %v70, %v230
  %232 = vmatmul.f32.gmra.mxu0 %v121
  %v233 = vpop.f32.mrf.mxu0
  %v234 = vadd.f32 %v70, %v233
  %235 = vmatmul.f32.gmra.mxu0 %v124
  %v236 = vpop.f32.mrf.mxu0
  %v237 = vadd.f32 %v70, %v236
  %238 = vmatmul.f32.gmra.mxu0 %v127
  %v239 = vpop.f32.mrf.mxu0
  %v240 = vadd.f32 %v70, %v239
  %241 = vmatmul.f32.gmra.mxu0 %v130
  %v242 = vpop.f32.mrf.mxu0
  %v243 = vadd.f32 %v70, %v242
  %244 = vmatmul.f32.gmra.mxu0 %v133
  %v245 = vpop.f32.mrf.mxu0
  %v246 = vadd.f32 %v70, %v245
  %247 = vmatmul.f32.gmra.mxu0 %v136
  %v248 = vpop.f32.mrf.mxu0
  %v249 = vadd.f32 %v70, %v248
  %250 = vmatmul.f32.gmra.mxu0 %v139
  %v251 = vpop.f32.mrf.mxu0
  %v252 = vadd.f32 %v70, %v251
  %253 = vmatmul.f32.gmra.mxu0 %v142
  %v254 = vpop.f32.mrf.mxu0
  %v255 = vadd.f32 %v70, %v254
  %256 = vmatmul.f32.gmra.mxu0 %v145
  %v257 = vpop.f32.mrf.mxu0
  %v258 = vadd.f32 %v70, %v257
  %259 = vmatmul.f32.gmra.mxu0 %v148
  %v260 = vpop.f32.mrf.mxu0
  %v261 = vadd.f32 %v70, %v260
  %262 = vmatmul.f32.gmra.mxu0 %v151
  %v263 = vpop.f32.mrf.mxu0
  %v264 = vadd.f32 %v70, %v263
  %265 = vmatmul.f32.gmra.mxu0 %v154
  %v266 = vpop.f32.mrf.mxu0
  %v267 = vadd.f32 %v70, %v266
  %268 = vmatmul.f32.gmra.mxu0 %v157
  %v269 = vpop.f32.mrf.mxu0
  %v270 = vadd.f32 %v70, %v269
  %271 = vmatmul.f32.gmra.mxu0 %v160
  %v272 = vpop.f32.mrf.mxu0
  %v273 = vadd.f32 %v70, %v272
  %274 = vmatmul.f32.gmra.mxu0 %v163
  %v275 = vpop.f32.mrf.mxu0
  %v276 = vadd.f32 %v70, %v275
  %277 = vmatmul.f32.gmra.mxu0 %v166
  %v278 = vpop.f32.mrf.mxu0
  %v279 = vadd.f32 %v70, %v278
  %280 = vmatmul.f32.gmra.mxu0 %v169
  %v281 = vpop.f32.mrf.mxu0
  %v282 = vadd.f32 %v70, %v281
  %283 = vdwg.mxu0
  %284 = vmatpush.msra.mxu0 0.0
  %285 = vmatpush.msra.mxu0 0.0
  %286 = vmatpush.msra.mxu0 0.0
  %287 = vmatpush.msra.mxu0 0.0
  %288 = vmatpush.msra.mxu0 0.0
  %289 = vmatpush.msra.mxu0 0.0
  %290 = vmatpush.msra.mxu0 0.0
  %291 = vmatpush.msra.mxu0 0.0
  %292 = vmatpush.msra.mxu0 0.0
  %293 = vmatpush.msra.mxu0 0.0
  %294 = vmatpush.msra.mxu0 0.0
  %295 = vmatpush.msra.mxu0 0.0
  %296 = vmatpush.msra.mxu0 0.0
  %297 = vmatpush.msra.mxu0 0.0
  %298 = vmatpush.msra.mxu0 %v67
  %299 = vmatpush.msra.mxu0 %v65
  %300 = vmatmul.f32.gmra.mxu0 %v76
  %v301 = vpop.f32.mrf.mxu0
  %v302 = vadd.f32 %v71, %v301
  %303 = vmatmul.f32.gmra.mxu0 %v79
  %v304 = vpop.f32.mrf.mxu0
  %v305 = vadd.f32 %v71, %v304
  %306 = vmatmul.f32.gmra.mxu0 %v82
  %v307 = vpop.f32.mrf.mxu0
  %v308 = vadd.f32 %v71, %v307
  %309 = vmatmul.f32.gmra.mxu0 %v85
  %v310 = vpop.f32.mrf.mxu0
  %v311 = vadd.f32 %v71, %v310
  %312 = vmatmul.f32.gmra.mxu0 %v88
  %v313 = vpop.f32.mrf.mxu0
  %v314 = vadd.f32 %v71, %v313
  %315 = vmatmul.f32.gmra.mxu0 %v91
  %v316 = vpop.f32.mrf.mxu0
  %v317 = vadd.f32 %v71, %v316
  %318 = vmatmul.f32.gmra.mxu0 %v94
  %v319 = vpop.f32.mrf.mxu0
  %v320 = vadd.f32 %v71, %v319
  %321 = vmatmul.f32.gmra.mxu0 %v97
  %v322 = vpop.f32.mrf.mxu0
  %v323 = vadd.f32 %v71, %v322
  %324 = vmatmul.f32.gmra.mxu0 %v100
  %v325 = vpop.f32.mrf.mxu0
  %v326 = vadd.f32 %v71, %v325
  %327 = vmatmul.f32.gmra.mxu0 %v103
  %v328 = vpop.f32.mrf.mxu0
  %v329 = vadd.f32 %v71, %v328
  %330 = vmatmul.f32.gmra.mxu0 %v106
  %v331 = vpop.f32.mrf.mxu0
  %v332 = vadd.f32 %v71, %v331
  %333 = vmatmul.f32.gmra.mxu0 %v109
  %v334 = vpop.f32.mrf.mxu0
  %v335 = vadd.f32 %v71, %v334
  %336 = vmatmul.f32.gmra.mxu0 %v112
  %v337 = vpop.f32.mrf.mxu0
  %v338 = vadd.f32 %v71, %v337
  %339 = vmatmul.f32.gmra.mxu0 %v115
  %v340 = vpop.f32.mrf.mxu0
  %v341 = vadd.f32 %v71, %v340
  %342 = vmatmul.f32.gmra.mxu0 %v118
  %v343 = vpop.f32.mrf.mxu0
  %v344 = vadd.f32 %v71, %v343
  %345 = vmatmul.f32.gmra.mxu0 %v121
  %v346 = vpop.f32.mrf.mxu0
  %v347 = vadd.f32 %v71, %v346
  %348 = vmatmul.f32.gmra.mxu0 %v124
  %v349 = vpop.f32.mrf.mxu0
  %v350 = vadd.f32 %v71, %v349
  %351 = vmatmul.f32.gmra.mxu0 %v127
  %v352 = vpop.f32.mrf.mxu0
  %v353 = vadd.f32 %v71, %v352
  %354 = vmatmul.f32.gmra.mxu0 %v130
  %v355 = vpop.f32.mrf.mxu0
  %v356 = vadd.f32 %v71, %v355
  %357 = vmatmul.f32.gmra.mxu0 %v133
  %v358 = vpop.f32.mrf.mxu0
  %v359 = vadd.f32 %v71, %v358
  %360 = vmatmul.f32.gmra.mxu0 %v136
  %v361 = vpop.f32.mrf.mxu0
  %v362 = vadd.f32 %v71, %v361
  %363 = vmatmul.f32.gmra.mxu0 %v139
  %v364 = vpop.f32.mrf.mxu0
  %v365 = vadd.f32 %v71, %v364
  %366 = vmatmul.f32.gmra.mxu0 %v142
  %v367 = vpop.f32.mrf.mxu0
  %v368 = vadd.f32 %v71, %v367
  %369 = vmatmul.f32.gmra.mxu0 %v145
  %v370 = vpop.f32.mrf.mxu0
  %v371 = vadd.f32 %v71, %v370
  %372 = vmatmul.f32.gmra.mxu0 %v148
  %v373 = vpop.f32.mrf.mxu0
  %v374 = vadd.f32 %v71, %v373
  %375 = vmatmul.f32.gmra.mxu0 %v151
  %v376 = vpop.f32.mrf.mxu0
  %v377 = vadd.f32 %v71, %v376
  %378 = vmatmul.f32.gmra.mxu0 %v154
  %v379 = vpop.f32.mrf.mxu0
  %v380 = vadd.f32 %v71, %v379
  %381 = vmatmul.f32.gmra.mxu0 %v157
  %v382 = vpop.f32.mrf.mxu0
  %v383 = vadd.f32 %v71, %v382
  %384 = vmatmul.f32.gmra.mxu0 %v160
  %v385 = vpop.f32.mrf.mxu0
  %v386 = vadd.f32 %v71, %v385
  %387 = vmatmul.f32.gmra.mxu0 %v163
  %v388 = vpop.f32.mrf.mxu0
  %v389 = vadd.f32 %v71, %v388
  %390 = vmatmul.f32.gmra.mxu0 %v166
  %v391 = vpop.f32.mrf.mxu0
  %v392 = vadd.f32 %v71, %v391
  %393 = vmatmul.f32.gmra.mxu0 %v169
  %v394 = vpop.f32.mrf.mxu0
  %v395 = vadd.f32 %v71, %v394
  %396 = vdwg.mxu0
  %v397 = vmax.f32 %v189, 0.0
  %v398 = vmax.f32 %v302, 0.0
  %v399 = vmax.f32 %v192, 0.0
  %v400 = vmax.f32 %v305, 0.0
  %v401 = vmax.f32 %v195, 0.0
  %v402 = vmax.f32 %v308, 0.0
  %v403 = vmax.f32 %v198, 0.0
  %v404 = vmax.f32 %v311, 0.0
  %v405 = vmax.f32 %v201, 0.0
  %v406 = vmax.f32 %v314, 0.0
  %v407 = vmax.f32 %v204, 0.0
  %v408 = vmax.f32 %v317, 0.0
  %v409 = vmax.f32 %v207, 0.0
  %v410 = vmax.f32 %v320, 0.0
  %v411 = vmax.f32 %v210, 0.0
  %v412 = vmax.f32 %v323, 0.0
  %v413 = vmax.f32 %v213, 0.0
  %v414 = vmax.f32 %v326, 0.0
  %v415 = vmax.f32 %v216, 0.0
  %v416 = vmax.f32 %v329, 0.0
  %v417 = vmax.f32 %v219, 0.0
  %v418 = vmax.f32 %v332, 0.0
  %v419 = vmax.f32 %v222, 0.0
  %v420 = vmax.f32 %v335, 0.0
  %v421 = vmax.f32 %v225, 0.0
  %v422 = vmax.f32 %v338, 0.0
  %v423 = vmax.f32 %v228, 0.0
  %v424 = vmax.f32 %v341, 0.0
  %v425 = vmax.f32 %v231, 0.0
  %v426 = vmax.f32 %v344, 0.0
  %v427 = vmax.f32 %v234, 0.0
  %v428 = vmax.f32 %v347, 0.0
  %v429 = vmax.f32 %v237, 0.0
  %v430 = vmax.f32 %v350, 0.0
  %v431 = vmax.f32 %v240, 0.0
  %v432 = vmax.f32 %v353, 0.0
  %v433 = vmax.f32 %v243, 0.0
  %v434 = vmax.f32 %v356, 0.0
  %v435 = vmax.f32 %v246, 0.0
  %v436 = vmax.f32 %v359, 0.0
  %v437 = vmax.f32 %v249, 0.0
  %v438 = vmax.f32 %v362, 0.0
  %v439 = vmax.f32 %v252, 0.0
  %v440 = vmax.f32 %v365, 0.0
  %v441 = vmax.f32 %v255, 0.0
  %v442 = vmax.f32 %v368, 0.0
  %v443 = vmax.f32 %v258, 0.0
  %v444 = vmax.f32 %v371, 0.0
  %v445 = vmax.f32 %v261, 0.0
  %v446 = vmax.f32 %v374, 0.0
  %v447 = vmax.f32 %v264, 0.0
  %v448 = vmax.f32 %v377, 0.0
  %v449 = vmax.f32 %v267, 0.0
  %v450 = vmax.f32 %v380, 0.0
  %v451 = vmax.f32 %v270, 0.0
  %v452 = vmax.f32 %v383, 0.0
  %v453 = vmax.f32 %v273, 0.0
  %v454 = vmax.f32 %v386, 0.0
  %v455 = vmax.f32 %v276, 0.0
  %v456 = vmax.f32 %v389, 0.0
  %v457 = vmax.f32 %v279, 0.0
  %v458 = vmax.f32 %v392, 0.0
  %v459 = vmax.f32 %v282, 0.0
  %v460 = vmax.f32 %v395, 0.0
  %v461 = vld [vmem:[%s3] sm:$0xff]
  %v462 = vld [vmem:[%s3 + $0x8] sm:$0xff]
  %v463 = vld [vmem:[%s3 + $0x10] sm:$0xff]
  %v464 = vld [vmem:[%s3 + $0x18] sm:$0xff]
  %v465 = vld [vmem:[%s3 + $0x20] sm:$0xff]
  %v466 = vld [vmem:[%s3 + $0x28] sm:$0xff]
  %v467 = vld [vmem:[%s3 + $0x30] sm:$0xff]
  %v468 = vld [vmem:[%s3 + $0x38] sm:$0xff]
  %v469 = vld [vmem:[%s3 + $0x40] sm:$0xff]
  %v470 = vld [vmem:[%s3 + $0x48] sm:$0xff]
  %v471 = vld [vmem:[%s3 + $0x50] sm:$0xff]
  %v472 = vld [vmem:[%s3 + $0x58] sm:$0xff]
  %v473 = vld [vmem:[%s3 + $0x60] sm:$0xff]
  %v474 = vld [vmem:[%s3 + $0x68] sm:$0xff]
  %v475 = vld [vmem:[%s3 + $0x70] sm:$0xff]
  %v476 = vld [vmem:[%s3 + $0x78] sm:$0xff]
  %v477 = vld [vmem:[%s3 + $0x80] sm:$0xff]
  %v478 = vld [vmem:[%s3 + $0x88] sm:$0xff]
  %v479 = vld [vmem:[%s3 + $0x90] sm:$0xff]
  %v480 = vld [vmem:[%s3 + $0x98] sm:$0xff]
  %v481 = vld [vmem:[%s3 + $0xa0] sm:$0xff]
  %v482 = vld [vmem:[%s3 + $0xa8] sm:$0xff]
  %v483 = vld [vmem:[%s3 + $0xb0] sm:$0xff]
  %v484 = vld [vmem:[%s3 + $0xb8] sm:$0xff]
  %v485 = vld [vmem:[%s3 + $0xc0] sm:$0xff]
  %v486 = vld [vmem:[%s3 + $0xc8] sm:$0xff]
  %v487 = vld [vmem:[%s3 + $0xd0] sm:$0xff]
  %v488 = vld [vmem:[%s3 + $0xd8] sm:$0xff]
  %v489 = vld [vmem:[%s3 + $0xe0] sm:$0xff]
  %v490 = vld [vmem:[%s3 + $0xe8] sm:$0xff]
  %v491 = vld [vmem:[%s3 + $0xf0] sm:$0xff]
  %v492 = vld [vmem:[%s3 + $0xf8] sm:$0xff]
  %v493 = vld [vmem:[%s3 + $0x100] sm:$0xff]
  %v494 = vld [vmem:[%s3 + $0x108] sm:$0xff]
  %v495 = vld [vmem:[%s3 + $0x110] sm:$0xff]
  %v496 = vld [vmem:[%s3 + $0x118] sm:$0xff]
  %v497 = vld [vmem:[%s3 + $0x120] sm:$0xff]
  %v498 = vld [vmem:[%s3 + $0x128] sm:$0xff]
  %v499 = vld [vmem:[%s3 + $0x130] sm:$0xff]
  %v500 = vld [vmem:[%s3 + $0x138] sm:$0xff]
  %v501 = vld [vmem:[%s3 + $0x140] sm:$0xff]
  %v502 = vld [vmem:[%s3 + $0x148] sm:$0xff]
  %v503 = vld [vmem:[%s3 + $0x150] sm:$0xff]
  %v504 = vld [vmem:[%s3 + $0x158] sm:$0xff]
  %v505 = vld [vmem:[%s3 + $0x160] sm:$0xff]
  %v506 = vld [vmem:[%s3 + $0x168] sm:$0xff]
  %v507 = vld [vmem:[%s3 + $0x170] sm:$0xff]
  %v508 = vld [vmem:[%s3 + $0x178] sm:$0xff]
  %v509 = vld [vmem:[%s3 + $0x180] sm:$0xff]
  %v510 = vld [vmem:[%s3 + $0x188] sm:$0xff]
  %v511 = vld [vmem:[%s3 + $0x190] sm:$0xff]
  %v512 = vld [vmem:[%s3 + $0x198] sm:$0xff]
  %v513 = vld [vmem:[%s3 + $0x1a0] sm:$0xff]
  %v514 = vld [vmem:[%s3 + $0x1a8] sm:$0xff]
  %v515 = vld [vmem:[%s3 + $0x1b0] sm:$0xff]
  %v516 = vld [vmem:[%s3 + $0x1b8] sm:$0xff]
  %v517 = vld [vmem:[%s3 + $0x1c0] sm:$0xff]
  %v518 = vld [vmem:[%s3 + $0x1c8] sm:$0xff]
  %v519 = vld [vmem:[%s3 + $0x1d0] sm:$0xff]
  %v520 = vld [vmem:[%s3 + $0x1d8] sm:$0xff]
  %v521 = vld [vmem:[%s3 + $0x1e0] sm:$0xff]
  %v522 = vld [vmem:[%s3 + $0x1e8] sm:$0xff]
  %v523 = vld [vmem:[%s3 + $0x1f0] sm:$0xff]
  %v524 = vld [vmem:[%s3 + $0x1f8] sm:$0xff]
  %v525 = vld [vmem:[%s4] sm:$0x3]
  %v527 = vperm.slane %v525, 0
  %v528 = vperm.slane %v525, 1
  %531 = vmatpush.msra.mxu0 %v491
  %532 = vmatpush.msra.mxu0 %v489
  %533 = vmatpush.msra.mxu0 %v487
  %534 = vmatpush.msra.mxu0 %v485
  %535 = vmatpush.msra.mxu0 %v483
  %536 = vmatpush.msra.mxu0 %v481
  %537 = vmatpush.msra.mxu0 %v479
  %538 = vmatpush.msra.mxu0 %v477
  %539 = vmatpush.msra.mxu0 %v475
  %540 = vmatpush.msra.mxu0 %v473
  %541 = vmatpush.msra.mxu0 %v471
  %542 = vmatpush.msra.mxu0 %v469
  %543 = vmatpush.msra.mxu0 %v467
  %544 = vmatpush.msra.mxu0 %v465
  %545 = vmatpush.msra.mxu0 %v463
  %546 = vmatpush.msra.mxu0 %v461
  %547 = vmatmul.f32.gmra.mxu0 %v397
  %v548 = vpop.f32.mrf.mxu0
  %v549 = vadd.f32 %v527, %v548
  %550 = vmatmul.f32.gmra.mxu0 %v399
  %v551 = vpop.f32.mrf.mxu0
  %v552 = vadd.f32 %v527, %v551
  %553 = vmatmul.f32.gmra.mxu0 %v401
  %v554 = vpop.f32.mrf.mxu0
  %v555 = vadd.f32 %v527, %v554
  %556 = vmatmul.f32.gmra.mxu0 %v403
  %v557 = vpop.f32.mrf.mxu0
  %v558 = vadd.f32 %v527, %v557
  %559 = vmatmul.f32.gmra.mxu0 %v405
  %v560 = vpop.f32.mrf.mxu0
  %v561 = vadd.f32 %v527, %v560
  %562 = vmatmul.f32.gmra.mxu0 %v407
  %v563 = vpop.f32.mrf.mxu0
  %v564 = vadd.f32 %v527, %v563
  %565 = vmatmul.f32.gmra.mxu0 %v409
  %v566 = vpop.f32.mrf.mxu0
  %v567 = vadd.f32 %v527, %v566
  %568 = vmatmul.f32.gmra.mxu0 %v411
  %v569 = vpop.f32.mrf.mxu0
  %v570 = vadd.f32 %v527, %v569
  %571 = vmatmul.f32.gmra.mxu0 %v413
  %v572 = vpop.f32.mrf.mxu0
  %v573 = vadd.f32 %v527, %v572
  %574 = vmatmul.f32.gmra.mxu0 %v415
  %v575 = vpop.f32.mrf.mxu0
  %v576 = vadd.f32 %v527, %v575
  %577 = vmatmul.f32.gmra.mxu0 %v417
  %v578 = vpop.f32.mrf.mxu0
  %v579 = vadd.f32 %v527, %v578
  %580 = vmatmul.f32.gmra.mxu0 %v419
  %v581 = vpop.f32.mrf.mxu0
  %v582 = vadd.f32 %v527, %v581
  %583 = vmatmul.f32.gmra.mxu0 %v421
  %v584 = vpop.f32.mrf.mxu0
  %v585 = vadd.f32 %v527, %v584
  %586 = vmatmul.f32.gmra.mxu0 %v423
  %v587 = vpop.f32.mrf.mxu0
  %v588 = vadd.f32 %v527, %v587
  %589 = vmatmul.f32.gmra.mxu0 %v425
  %v590 = vpop.f32.mrf.mxu0
  %v591 = vadd.f32 %v527, %v590
  %592 = vmatmul.f32.gmra.mxu0 %v427
  %v593 = vpop.f32.mrf.mxu0
  %v594 = vadd.f32 %v527, %v593
  %595 = vmatmul.f32.gmra.mxu0 %v429
  %v596 = vpop.f32.mrf.mxu0
  %v597 = vadd.f32 %v527, %v596
  %598 = vmatmul.f32.gmra.mxu0 %v431
  %v599 = vpop.f32.mrf.mxu0
  %v600 = vadd.f32 %v527, %v599
  %601 = vmatmul.f32.gmra.mxu0 %v433
  %v602 = vpop.f32.mrf.mxu0
  %v603 = vadd.f32 %v527, %v602
  %604 = vmatmul.f32.gmra.mxu0 %v435
  %v605 = vpop.f32.mrf.mxu0
  %v606 = vadd.f32 %v527, %v605
  %607 = vmatmul.f32.gmra.mxu0 %v437
  %v608 = vpop.f32.mrf.mxu0
  %v609 = vadd.f32 %v527, %v608
  %610 = vmatmul.f32.gmra.mxu0 %v439
  %v611 = vpop.f32.mrf.mxu0
  %v612 = vadd.f32 %v527, %v611
  %613 = vmatmul.f32.gmra.mxu0 %v441
  %v614 = vpop.f32.mrf.mxu0
  %v615 = vadd.f32 %v527, %v614
  %616 = vmatmul.f32.gmra.mxu0 %v443
  %v617 = vpop.f32.mrf.mxu0
  %v618 = vadd.f32 %v527, %v617
  %619 = vmatmul.f32.gmra.mxu0 %v445
  %v620 = vpop.f32.mrf.mxu0
  %v621 = vadd.f32 %v527, %v620
  %622 = vmatmul.f32.gmra.mxu0 %v447
  %v623 = vpop.f32.mrf.mxu0
  %v624 = vadd.f32 %v527, %v623
  %625 = vmatmul.f32.gmra.mxu0 %v449
  %v626 = vpop.f32.mrf.mxu0
  %v627 = vadd.f32 %v527, %v626
  %628 = vmatmul.f32.gmra.mxu0 %v451
  %v629 = vpop.f32.mrf.mxu0
  %v630 = vadd.f32 %v527, %v629
  %631 = vmatmul.f32.gmra.mxu0 %v453
  %v632 = vpop.f32.mrf.mxu0
  %v633 = vadd.f32 %v527, %v632
  %634 = vmatmul.f32.gmra.mxu0 %v455
  %v635 = vpop.f32.mrf.mxu0
  %v636 = vadd.f32 %v527, %v635
  %637 = vmatmul.f32.gmra.mxu0 %v457
  %v638 = vpop.f32.mrf.mxu0
  %v639 = vadd.f32 %v527, %v638
  %640 = vmatmul.f32.gmra.mxu0 %v459
  %v641 = vpop.f32.mrf.mxu0
  %v642 = vadd.f32 %v527, %v641
  %643 = vdwg.mxu0
  %644 = vmatpush.msra.mxu0 %v523
  %645 = vmatpush.msra.mxu0 %v521
  %646 = vmatpush.msra.mxu0 %v519
  %647 = vmatpush.msra.mxu0 %v517
  %648 = vmatpush.msra.mxu0 %v515
  %649 = vmatpush.msra.mxu0 %v513
  %650 = vmatpush.msra.mxu0 %v511
  %651 = vmatpush.msra.mxu0 %v509
  %652 = vmatpush.msra.mxu0 %v507
  %653 = vmatpush.msra.mxu0 %v505
  %654 = vmatpush.msra.mxu0 %v503
  %655 = vmatpush.msra.mxu0 %v501
  %656 = vmatpush.msra.mxu0 %v499
  %657 = vmatpush.msra.mxu0 %v497
  %658 = vmatpush.msra.mxu0 %v495
  %659 = vmatpush.msra.mxu0 %v493
  %660 = vmatmul.f32.gmra.mxu0 %v398
  %v661 = vpop.f32.mrf.mxu0
  %v662 = vadd.f32 %v549, %v661
  %663 = vmatmul.f32.gmra.mxu0 %v400
  %v664 = vpop.f32.mrf.mxu0
  %v665 = vadd.f32 %v552, %v664
  %666 = vmatmul.f32.gmra.mxu0 %v402
  %v667 = vpop.f32.mrf.mxu0
  %v668 = vadd.f32 %v555, %v667
  %669 = vmatmul.f32.gmra.mxu0 %v404
  %v670 = vpop.f32.mrf.mxu0
  %v671 = vadd.f32 %v558, %v670
  %672 = vmatmul.f32.gmra.mxu0 %v406
  %v673 = vpop.f32.mrf.mxu0
  %v674 = vadd.f32 %v561, %v673
  %675 = vmatmul.f32.gmra.mxu0 %v408
  %v676 = vpop.f32.mrf.mxu0
  %v677 = vadd.f32 %v564, %v676
  %678 = vmatmul.f32.gmra.mxu0 %v410
  %v679 = vpop.f32.mrf.mxu0
  %v680 = vadd.f32 %v567, %v679
  %681 = vmatmul.f32.gmra.mxu0 %v412
  %v682 = vpop.f32.mrf.mxu0
  %v683 = vadd.f32 %v570, %v682
  %684 = vmatmul.f32.gmra.mxu0 %v414
  %v685 = vpop.f32.mrf.mxu0
  %v686 = vadd.f32 %v573, %v685
  %687 = vmatmul.f32.gmra.mxu0 %v416
  %v688 = vpop.f32.mrf.mxu0
  %v689 = vadd.f32 %v576, %v688
  %690 = vmatmul.f32.gmra.mxu0 %v418
  %v691 = vpop.f32.mrf.mxu0
  %v692 = vadd.f32 %v579, %v691
  %693 = vmatmul.f32.gmra.mxu0 %v420
  %v694 = vpop.f32.mrf.mxu0
  %v695 = vadd.f32 %v582, %v694
  %696 = vmatmul.f32.gmra.mxu0 %v422
  %v697 = vpop.f32.mrf.mxu0
  %v698 = vadd.f32 %v585, %v697
  %699 = vmatmul.f32.gmra.mxu0 %v424
  %v700 = vpop.f32.mrf.mxu0
  %v701 = vadd.f32 %v588, %v700
  %702 = vmatmul.f32.gmra.mxu0 %v426
  %v703 = vpop.f32.mrf.mxu0
  %v704 = vadd.f32 %v591, %v703
  %705 = vmatmul.f32.gmra.mxu0 %v428
  %v706 = vpop.f32.mrf.mxu0
  %v707 = vadd.f32 %v594, %v706
  %708 = vmatmul.f32.gmra.mxu0 %v430
  %v709 = vpop.f32.mrf.mxu0
  %v710 = vadd.f32 %v597, %v709
  %711 = vmatmul.f32.gmra.mxu0 %v432
  %v712 = vpop.f32.mrf.mxu0
  %v713 = vadd.f32 %v600, %v712
  %714 = vmatmul.f32.gmra.mxu0 %v434
  %v715 = vpop.f32.mrf.mxu0
  %v716 = vadd.f32 %v603, %v715
  %717 = vmatmul.f32.gmra.mxu0 %v436
  %v718 = vpop.f32.mrf.mxu0
  %v719 = vadd.f32 %v606, %v718
  %720 = vmatmul.f32.gmra.mxu0 %v438
  %v721 = vpop.f32.mrf.mxu0
  %v722 = vadd.f32 %v609, %v721
  %723 = vmatmul.f32.gmra.mxu0 %v440
  %v724 = vpop.f32.mrf.mxu0
  %v725 = vadd.f32 %v612, %v724
  %726 = vmatmul.f32.gmra.mxu0 %v442
  %v727 = vpop.f32.mrf.mxu0
  %v728 = vadd.f32 %v615, %v727
  %729 = vmatmul.f32.gmra.mxu0 %v444
  %v730 = vpop.f32.mrf.mxu0
  %v731 = vadd.f32 %v618, %v730
  %732 = vmatmul.f32.gmra.mxu0 %v446
  %v733 = vpop.f32.mrf.mxu0
  %v734 = vadd.f32 %v621, %v733
  %735 = vmatmul.f32.gmra.mxu0 %v448
  %v736 = vpop.f32.mrf.mxu0
  %v737 = vadd.f32 %v624, %v736
  %738 = vmatmul.f32.gmra.mxu0 %v450
  %v739 = vpop.f32.mrf.mxu0
  %v740 = vadd.f32 %v627, %v739
  %741 = vmatmul.f32.gmra.mxu0 %v452
  %v742 = vpop.f32.mrf.mxu0
  %v743 = vadd.f32 %v630, %v742
  %744 = vmatmul.f32.gmra.mxu0 %v454
  %v745 = vpop.f32.mrf.mxu0
  %v746 = vadd.f32 %v633, %v745
  %747 = vmatmul.f32.gmra.mxu0 %v456
  %v748 = vpop.f32.mrf.mxu0
  %v749 = vadd.f32 %v636, %v748
  %750 = vmatmul.f32.gmra.mxu0 %v458
  %v751 = vpop.f32.mrf.mxu0
  %v752 = vadd.f32 %v639, %v751
  %753 = vmatmul.f32.gmra.mxu0 %v460
  %v754 = vpop.f32.mrf.mxu0
  %v755 = vadd.f32 %v642, %v754
  %756 = vdwg.mxu0
  %757 = vmatpush.msra.mxu0 %v492
  %758 = vmatpush.msra.mxu0 %v490
  %759 = vmatpush.msra.mxu0 %v488
  %760 = vmatpush.msra.mxu0 %v486
  %761 = vmatpush.msra.mxu0 %v484
  %762 = vmatpush.msra.mxu0 %v482
  %763 = vmatpush.msra.mxu0 %v480
  %764 = vmatpush.msra.mxu0 %v478
  %765 = vmatpush.msra.mxu0 %v476
  %766 = vmatpush.msra.mxu0 %v474
  %767 = vmatpush.msra.mxu0 %v472
  %768 = vmatpush.msra.mxu0 %v470
  %769 = vmatpush.msra.mxu0 %v468
  %770 = vmatpush.msra.mxu0 %v466
  %771 = vmatpush.msra.mxu0 %v464
  %772 = vmatpush.msra.mxu0 %v462
  %773 = vmatmul.f32.gmra.mxu0 %v397
  %v774 = vpop.f32.mrf.mxu0
  %v775 = vadd.f32 %v528, %v774
  %776 = vmatmul.f32.gmra.mxu0 %v399
  %v777 = vpop.f32.mrf.mxu0
  %v778 = vadd.f32 %v528, %v777
  %779 = vmatmul.f32.gmra.mxu0 %v401
  %v780 = vpop.f32.mrf.mxu0
  %v781 = vadd.f32 %v528, %v780
  %782 = vmatmul.f32.gmra.mxu0 %v403
  %v783 = vpop.f32.mrf.mxu0
  %v784 = vadd.f32 %v528, %v783
  %785 = vmatmul.f32.gmra.mxu0 %v405
  %v786 = vpop.f32.mrf.mxu0
  %v787 = vadd.f32 %v528, %v786
  %788 = vmatmul.f32.gmra.mxu0 %v407
  %v789 = vpop.f32.mrf.mxu0
  %v790 = vadd.f32 %v528, %v789
  %791 = vmatmul.f32.gmra.mxu0 %v409
  %v792 = vpop.f32.mrf.mxu0
  %v793 = vadd.f32 %v528, %v792
  %794 = vmatmul.f32.gmra.mxu0 %v411
  %v795 = vpop.f32.mrf.mxu0
  %v796 = vadd.f32 %v528, %v795
  %797 = vmatmul.f32.gmra.mxu0 %v413
  %v798 = vpop.f32.mrf.mxu0
  %v799 = vadd.f32 %v528, %v798
  %800 = vmatmul.f32.gmra.mxu0 %v415
  %v801 = vpop.f32.mrf.mxu0
  %v802 = vadd.f32 %v528, %v801
  %803 = vmatmul.f32.gmra.mxu0 %v417
  %v804 = vpop.f32.mrf.mxu0
  %v805 = vadd.f32 %v528, %v804
  %806 = vmatmul.f32.gmra.mxu0 %v419
  %v807 = vpop.f32.mrf.mxu0
  %v808 = vadd.f32 %v528, %v807
  %809 = vmatmul.f32.gmra.mxu0 %v421
  %v810 = vpop.f32.mrf.mxu0
  %v811 = vadd.f32 %v528, %v810
  %812 = vmatmul.f32.gmra.mxu0 %v423
  %v813 = vpop.f32.mrf.mxu0
  %v814 = vadd.f32 %v528, %v813
  %815 = vmatmul.f32.gmra.mxu0 %v425
  %v816 = vpop.f32.mrf.mxu0
  %v817 = vadd.f32 %v528, %v816
  %818 = vmatmul.f32.gmra.mxu0 %v427
  %v819 = vpop.f32.mrf.mxu0
  %v820 = vadd.f32 %v528, %v819
  %821 = vmatmul.f32.gmra.mxu0 %v429
  %v822 = vpop.f32.mrf.mxu0
  %v823 = vadd.f32 %v528, %v822
  %824 = vmatmul.f32.gmra.mxu0 %v431
  %v825 = vpop.f32.mrf.mxu0
  %v826 = vadd.f32 %v528, %v825
  %827 = vmatmul.f32.gmra.mxu0 %v433
  %v828 = vpop.f32.mrf.mxu0
  %v829 = vadd.f32 %v528, %v828
  %830 = vmatmul.f32.gmra.mxu0 %v435
  %v831 = vpop.f32.mrf.mxu0
  %v832 = vadd.f32 %v528, %v831
  %833 = vmatmul.f32.gmra.mxu0 %v437
  %v834 = vpop.f32.mrf.mxu0
  %v835 = vadd.f32 %v528, %v834
  %836 = vmatmul.f32.gmra.mxu0 %v439
  %v837 = vpop.f32.mrf.mxu0
  %v838 = vadd.f32 %v528, %v837
  %839 = vmatmul.f32.gmra.mxu0 %v441
  %v840 = vpop.f32.mrf.mxu0
  %v841 = vadd.f32 %v528, %v840
  %842 = vmatmul.f32.gmra.mxu0 %v443
  %v843 = vpop.f32.mrf.mxu0
  %v844 = vadd.f32 %v528, %v843
  %845 = vmatmul.f32.gmra.mxu0 %v445
  %v846 = vpop.f32.mrf.mxu0
  %v847 = vadd.f32 %v528, %v846
  %848 = vmatmul.f32.gmra.mxu0 %v447
  %v849 = vpop.f32.mrf.mxu0
  %v850 = vadd.f32 %v528, %v849
  %851 = vmatmul.f32.gmra.mxu0 %v449
  %v852 = vpop.f32.mrf.mxu0
  %v853 = vadd.f32 %v528, %v852
  %854 = vmatmul.f32.gmra.mxu0 %v451
  %v855 = vpop.f32.mrf.mxu0
  %v856 = vadd.f32 %v528, %v855
  %857 = vmatmul.f32.gmra.mxu0 %v453
  %v858 = vpop.f32.mrf.mxu0
  %v859 = vadd.f32 %v528, %v858
  %860 = vmatmul.f32.gmra.mxu0 %v455
  %v861 = vpop.f32.mrf.mxu0
  %v862 = vadd.f32 %v528, %v861
  %863 = vmatmul.f32.gmra.mxu0 %v457
  %v864 = vpop.f32.mrf.mxu0
  %v865 = vadd.f32 %v528, %v864
  %866 = vmatmul.f32.gmra.mxu0 %v459
  %v867 = vpop.f32.mrf.mxu0
  %v868 = vadd.f32 %v528, %v867
  %869 = vdwg.mxu0
  %870 = vmatpush.msra.mxu0 %v524
  %871 = vmatpush.msra.mxu0 %v522
  %872 = vmatpush.msra.mxu0 %v520
  %873 = vmatpush.msra.mxu0 %v518
  %874 = vmatpush.msra.mxu0 %v516
  %875 = vmatpush.msra.mxu0 %v514
  %876 = vmatpush.msra.mxu0 %v512
  %877 = vmatpush.msra.mxu0 %v510
  %878 = vmatpush.msra.mxu0 %v508
  %879 = vmatpush.msra.mxu0 %v506
  %880 = vmatpush.msra.mxu0 %v504
  %881 = vmatpush.msra.mxu0 %v502
  %882 = vmatpush.msra.mxu0 %v500
  %883 = vmatpush.msra.mxu0 %v498
  %884 = vmatpush.msra.mxu0 %v496
  %885 = vmatpush.msra.mxu0 %v494
  %886 = vmatmul.f32.gmra.mxu0 %v398
  %v887 = vpop.f32.mrf.mxu0
  %v888 = vadd.f32 %v775, %v887
  %889 = vmatmul.f32.gmra.mxu0 %v400
  %v890 = vpop.f32.mrf.mxu0
  %v891 = vadd.f32 %v778, %v890
  %892 = vmatmul.f32.gmra.mxu0 %v402
  %v893 = vpop.f32.mrf.mxu0
  %v894 = vadd.f32 %v781, %v893
  %895 = vmatmul.f32.gmra.mxu0 %v404
  %v896 = vpop.f32.mrf.mxu0
  %v897 = vadd.f32 %v784, %v896
  %898 = vmatmul.f32.gmra.mxu0 %v406
  %v899 = vpop.f32.mrf.mxu0
  %v900 = vadd.f32 %v787, %v899
  %901 = vmatmul.f32.gmra.mxu0 %v408
  %v902 = vpop.f32.mrf.mxu0
  %v903 = vadd.f32 %v790, %v902
  %904 = vmatmul.f32.gmra.mxu0 %v410
  %v905 = vpop.f32.mrf.mxu0
  %v906 = vadd.f32 %v793, %v905
  %907 = vmatmul.f32.gmra.mxu0 %v412
  %v908 = vpop.f32.mrf.mxu0
  %v909 = vadd.f32 %v796, %v908
  %910 = vmatmul.f32.gmra.mxu0 %v414
  %v911 = vpop.f32.mrf.mxu0
  %v912 = vadd.f32 %v799, %v911
  %913 = vmatmul.f32.gmra.mxu0 %v416
  %v914 = vpop.f32.mrf.mxu0
  %v915 = vadd.f32 %v802, %v914
  %916 = vmatmul.f32.gmra.mxu0 %v418
  %v917 = vpop.f32.mrf.mxu0
  %v918 = vadd.f32 %v805, %v917
  %919 = vmatmul.f32.gmra.mxu0 %v420
  %v920 = vpop.f32.mrf.mxu0
  %v921 = vadd.f32 %v808, %v920
  %922 = vmatmul.f32.gmra.mxu0 %v422
  %v923 = vpop.f32.mrf.mxu0
  %v924 = vadd.f32 %v811, %v923
  %925 = vmatmul.f32.gmra.mxu0 %v424
  %v926 = vpop.f32.mrf.mxu0
  %v927 = vadd.f32 %v814, %v926
  %928 = vmatmul.f32.gmra.mxu0 %v426
  %v929 = vpop.f32.mrf.mxu0
  %v930 = vadd.f32 %v817, %v929
  %931 = vmatmul.f32.gmra.mxu0 %v428
  %v932 = vpop.f32.mrf.mxu0
  %v933 = vadd.f32 %v820, %v932
  %934 = vmatmul.f32.gmra.mxu0 %v430
  %v935 = vpop.f32.mrf.mxu0
  %v936 = vadd.f32 %v823, %v935
  %937 = vmatmul.f32.gmra.mxu0 %v432
  %v938 = vpop.f32.mrf.mxu0
  %v939 = vadd.f32 %v826, %v938
  %940 = vmatmul.f32.gmra.mxu0 %v434
  %v941 = vpop.f32.mrf.mxu0
  %v942 = vadd.f32 %v829, %v941
  %943 = vmatmul.f32.gmra.mxu0 %v436
  %v944 = vpop.f32.mrf.mxu0
  %v945 = vadd.f32 %v832, %v944
  %946 = vmatmul.f32.gmra.mxu0 %v438
  %v947 = vpop.f32.mrf.mxu0
  %v948 = vadd.f32 %v835, %v947
  %949 = vmatmul.f32.gmra.mxu0 %v440
  %v950 = vpop.f32.mrf.mxu0
  %v951 = vadd.f32 %v838, %v950
  %952 = vmatmul.f32.gmra.mxu0 %v442
  %v953 = vpop.f32.mrf.mxu0
  %v954 = vadd.f32 %v841, %v953
  %955 = vmatmul.f32.gmra.mxu0 %v444
  %v956 = vpop.f32.mrf.mxu0
  %v957 = vadd.f32 %v844, %v956
  %958 = vmatmul.f32.gmra.mxu0 %v446
  %v959 = vpop.f32.mrf.mxu0
  %v960 = vadd.f32 %v847, %v959
  %961 = vmatmul.f32.gmra.mxu0 %v448
  %v962 = vpop.f32.mrf.mxu0
  %v963 = vadd.f32 %v850, %v962
  %964 = vmatmul.f32.gmra.mxu0 %v450
  %v965 = vpop.f32.mrf.mxu0
  %v966 = vadd.f32 %v853, %v965
  %967 = vmatmul.f32.gmra.mxu0 %v452
  %v968 = vpop.f32.mrf.mxu0
  %v969 = vadd.f32 %v856, %v968
  %970 = vmatmul.f32.gmra.mxu0 %v454
  %v971 = vpop.f32.mrf.mxu0
  %v972 = vadd.f32 %v859, %v971
  %973 = vmatmul.f32.gmra.mxu0 %v456
  %v974 = vpop.f32.mrf.mxu0
  %v975 = vadd.f32 %v862, %v974
  %976 = vmatmul.f32.gmra.mxu0 %v458
  %v977 = vpop.f32.mrf.mxu0
  %v978 = vadd.f32 %v865, %v977
  %979 = vmatmul.f32.gmra.mxu0 %v460
  %v980 = vpop.f32.mrf.mxu0
  %v981 = vadd.f32 %v868, %v980
  %982 = vdwg.mxu0
  %v983 = vmax.f32 %v662, 0.0
  %v984 = vmax.f32 %v888, 0.0
  %v985 = vmax.f32 %v665, 0.0
  %v986 = vmax.f32 %v891, 0.0
  %v987 = vmax.f32 %v668, 0.0
  %v988 = vmax.f32 %v894, 0.0
  %v989 = vmax.f32 %v671, 0.0
  %v990 = vmax.f32 %v897, 0.0
  %v991 = vmax.f32 %v674, 0.0
  %v992 = vmax.f32 %v900, 0.0
  %v993 = vmax.f32 %v677, 0.0
  %v994 = vmax.f32 %v903, 0.0
  %v995 = vmax.f32 %v680, 0.0
  %v996 = vmax.f32 %v906, 0.0
  %v997 = vmax.f32 %v683, 0.0
  %v998 = vmax.f32 %v909, 0.0
  %v999 = vmax.f32 %v686, 0.0
  %v1000 = vmax.f32 %v912, 0.0
  %v1001 = vmax.f32 %v689, 0.0
  %v1002 = vmax.f32 %v915, 0.0
  %v1003 = vmax.f32 %v692, 0.0
  %v1004 = vmax.f32 %v918, 0.0
  %v1005 = vmax.f32 %v695, 0.0
  %v1006 = vmax.f32 %v921, 0.0
  %v1007 = vmax.f32 %v698, 0.0
  %v1008 = vmax.f32 %v924, 0.0
  %v1009 = vmax.f32 %v701, 0.0
  %v1010 = vmax.f32 %v927, 0.0
  %v1011 = vmax.f32 %v704, 0.0
  %v1012 = vmax.f32 %v930, 0.0
  %v1013 = vmax.f32 %v707, 0.0
  %v1014 = vmax.f32 %v933, 0.0
  %v1015 = vmax.f32 %v710, 0.0
  %v1016 = vmax.f32 %v936, 0.0
  %v1017 = vmax.f32 %v713, 0.0
  %v1018 = vmax.f32 %v939, 0.0
  %v1019 = vmax.f32 %v716, 0.0
  %v1020 = vmax.f32 %v942, 0.0
  %v1021 = vmax.f32 %v719, 0.0
  %v1022 = vmax.f32 %v945, 0.0
  %v1023 = vmax.f32 %v722, 0.0
  %v1024 = vmax.f32 %v948, 0.0
  %v1025 = vmax.f32 %v725, 0.0
  %v1026 = vmax.f32 %v951, 0.0
  %v1027 = vmax.f32 %v728, 0.0
  %v1028 = vmax.f32 %v954, 0.0
  %v1029 = vmax.f32 %v731, 0.0
  %v1030 = vmax.f32 %v957, 0.0
  %v1031 = vmax.f32 %v734, 0.0
  %v1032 = vmax.f32 %v960, 0.0
  %v1033 = vmax.f32 %v737, 0.0
  %v1034 = vmax.f32 %v963, 0.0
  %v1035 = vmax.f32 %v740, 0.0
  %v1036 = vmax.f32 %v966, 0.0
  %v1037 = vmax.f32 %v743, 0.0
  %v1038 = vmax.f32 %v969, 0.0
  %v1039 = vmax.f32 %v746, 0.0
  %v1040 = vmax.f32 %v972, 0.0
  %v1041 = vmax.f32 %v749, 0.0
  %v1042 = vmax.f32 %v975, 0.0
  %v1043 = vmax.f32 %v752, 0.0
  %v1044 = vmax.f32 %v978, 0.0
  %v1045 = vmax.f32 %v755, 0.0
  %v1046 = vmax.f32 %v981, 0.0
  %v1047 = vld [vmem:[%s5] sm:$0xff]
  %v1048 = vld [vmem:[%s5 + $0x8] sm:$0xff]
  %v1049 = vld [vmem:[%s5 + $0x10] sm:$0xff]
  %v1050 = vld [vmem:[%s5 + $0x18] sm:$0xff]
  %v1051 = vld [vmem:[%s5 + $0x20] sm:$0xff]
  %v1052 = vld [vmem:[%s5 + $0x28] sm:$0xff]
  %v1053 = vld [vmem:[%s5 + $0x30] sm:$0xff]
  %v1054 = vld [vmem:[%s5 + $0x38] sm:$0xff]
  %v1055 = vld [vmem:[%s5 + $0x40] sm:$0xff]
  %v1056 = vld [vmem:[%s5 + $0x48] sm:$0xff]
  %v1057 = vld [vmem:[%s5 + $0x50] sm:$0xff]
  %v1058 = vld [vmem:[%s5 + $0x58] sm:$0xff]
  %v1059 = vld [vmem:[%s5 + $0x60] sm:$0xff]
  %v1060 = vld [vmem:[%s5 + $0x68] sm:$0xff]
  %v1061 = vld [vmem:[%s5 + $0x70] sm:$0xff]
  %v1062 = vld [vmem:[%s5 + $0x78] sm:$0xff]
  %v1063 = vld [vmem:[%s5 + $0x80] sm:$0xff]
  %v1064 = vld [vmem:[%s5 + $0x88] sm:$0xff]
  %v1065 = vld [vmem:[%s5 + $0x90] sm:$0xff]
  %v1066 = vld [vmem:[%s5 + $0x98] sm:$0xff]
  %v1067 = vld [vmem:[%s5 + $0xa0] sm:$0xff]
  %v1068 = vld [vmem:[%s5 + $0xa8] sm:$0xff]
  %v1069 = vld [vmem:[%s5 + $0xb0] sm:$0xff]
  %v1070 = vld [vmem:[%s5 + $0xb8] sm:$0xff]
  %v1071 = vld [vmem:[%s5 + $0xc0] sm:$0xff]
  %v1072 = vld [vmem:[%s5 + $0xc8] sm:$0xff]
  %v1073 = vld [vmem:[%s5 + $0xd0] sm:$0xff]
  %v1074 = vld [vmem:[%s5 + $0xd8] sm:$0xff]
  %v1075 = vld [vmem:[%s5 + $0xe0] sm:$0xff]
  %v1076 = vld [vmem:[%s5 + $0xe8] sm:$0xff]
  %v1077 = vld [vmem:[%s5 + $0xf0] sm:$0xff]
  %v1078 = vld [vmem:[%s5 + $0xf8] sm:$0xff]
  %v1079 = vld [vmem:[%s6] sm:$0x1]
  %v1081 = vperm.slane %v1079, 0
  %1083 = vmatpush.msra.mxu0 %v1062
  %1084 = vmatpush.msra.mxu0 %v1061
  %1085 = vmatpush.msra.mxu0 %v1060
  %1086 = vmatpush.msra.mxu0 %v1059
  %1087 = vmatpush.msra.mxu0 %v1058
  %1088 = vmatpush.msra.mxu0 %v1057
  %1089 = vmatpush.msra.mxu0 %v1056
  %1090 = vmatpush.msra.mxu0 %v1055
  %1091 = vmatpush.msra.mxu0 %v1054
  %1092 = vmatpush.msra.mxu0 %v1053
  %1093 = vmatpush.msra.mxu0 %v1052
  %1094 = vmatpush.msra.mxu0 %v1051
  %1095 = vmatpush.msra.mxu0 %v1050
  %1096 = vmatpush.msra.mxu0 %v1049
  %1097 = vmatpush.msra.mxu0 %v1048
  %1098 = vmatpush.msra.mxu0 %v1047
  %1099 = vmatmul.f32.gmra.mxu0 %v983
  %v1100 = vpop.f32.mrf.mxu0
  %v1101 = vadd.f32 %v1081, %v1100
  %1102 = vmatmul.f32.gmra.mxu0 %v985
  %v1103 = vpop.f32.mrf.mxu0
  %v1104 = vadd.f32 %v1081, %v1103
  %1105 = vmatmul.f32.gmra.mxu0 %v987
  %v1106 = vpop.f32.mrf.mxu0
  %v1107 = vadd.f32 %v1081, %v1106
  %1108 = vmatmul.f32.gmra.mxu0 %v989
  %v1109 = vpop.f32.mrf.mxu0
  %v1110 = vadd.f32 %v1081, %v1109
  %1111 = vmatmul.f32.gmra.mxu0 %v991
  %v1112 = vpop.f32.mrf.mxu0
  %v1113 = vadd.f32 %v1081, %v1112
  %1114 = vmatmul.f32.gmra.mxu0 %v993
  %v1115 = vpop.f32.mrf.mxu0
  %v1116 = vadd.f32 %v1081, %v1115
  %1117 = vmatmul.f32.gmra.mxu0 %v995
  %v1118 = vpop.f32.mrf.mxu0
  %v1119 = vadd.f32 %v1081, %v1118
  %1120 = vmatmul.f32.gmra.mxu0 %v997
  %v1121 = vpop.f32.mrf.mxu0
  %v1122 = vadd.f32 %v1081, %v1121
  %1123 = vmatmul.f32.gmra.mxu0 %v999
  %v1124 = vpop.f32.mrf.mxu0
  %v1125 = vadd.f32 %v1081, %v1124
  %1126 = vmatmul.f32.gmra.mxu0 %v1001
  %v1127 = vpop.f32.mrf.mxu0
  %v1128 = vadd.f32 %v1081, %v1127
  %1129 = vmatmul.f32.gmra.mxu0 %v1003
  %v1130 = vpop.f32.mrf.mxu0
  %v1131 = vadd.f32 %v1081, %v1130
  %1132 = vmatmul.f32.gmra.mxu0 %v1005
  %v1133 = vpop.f32.mrf.mxu0
  %v1134 = vadd.f32 %v1081, %v1133
  %1135 = vmatmul.f32.gmra.mxu0 %v1007
  %v1136 = vpop.f32.mrf.mxu0
  %v1137 = vadd.f32 %v1081, %v1136
  %1138 = vmatmul.f32.gmra.mxu0 %v1009
  %v1139 = vpop.f32.mrf.mxu0
  %v1140 = vadd.f32 %v1081, %v1139
  %1141 = vmatmul.f32.gmra.mxu0 %v1011
  %v1142 = vpop.f32.mrf.mxu0
  %v1143 = vadd.f32 %v1081, %v1142
  %1144 = vmatmul.f32.gmra.mxu0 %v1013
  %v1145 = vpop.f32.mrf.mxu0
  %v1146 = vadd.f32 %v1081, %v1145
  %1147 = vmatmul.f32.gmra.mxu0 %v1015
  %v1148 = vpop.f32.mrf.mxu0
  %v1149 = vadd.f32 %v1081, %v1148
  %1150 = vmatmul.f32.gmra.mxu0 %v1017
  %v1151 = vpop.f32.mrf.mxu0
  %v1152 = vadd.f32 %v1081, %v1151
  %1153 = vmatmul.f32.gmra.mxu0 %v1019
  %v1154 = vpop.f32.mrf.mxu0
  %v1155 = vadd.f32 %v1081, %v1154
  %1156 = vmatmul.f32.gmra.mxu0 %v1021
  %v1157 = vpop.f32.mrf.mxu0
  %v1158 = vadd.f32 %v1081, %v1157
  %1159 = vmatmul.f32.gmra.mxu0 %v1023
  %v1160 = vpop.f32.mrf.mxu0
  %v1161 = vadd.f32 %v1081, %v1160
  %1162 = vmatmul.f32.gmra.mxu0 %v1025
  %v1163 = vpop.f32.mrf.mxu0
  %v1164 = vadd.f32 %v1081, %v1163
  %1165 = vmatmul.f32.gmra.mxu0 %v1027
  %v1166 = vpop.f32.mrf.mxu0
  %v1167 = vadd.f32 %v1081, %v1166
  %1168 = vmatmul.f32.gmra.mxu0 %v1029
  %v1169 = vpop.f32.mrf.mxu0
  %v1170 = vadd.f32 %v1081, %v1169
  %1171 = vmatmul.f32.gmra.mxu0 %v1031
  %v1172 = vpop.f32.mrf.mxu0
  %v1173 = vadd.f32 %v1081, %v1172
  %1174 = vmatmul.f32.gmra.mxu0 %v1033
  %v1175 = vpop.f32.mrf.mxu0
  %v1176 = vadd.f32 %v1081, %v1175
  %1177 = vmatmul.f32.gmra.mxu0 %v1035
  %v1178 = vpop.f32.mrf.mxu0
  %v1179 = vadd.f32 %v1081, %v1178
  %1180 = vmatmul.f32.gmra.mxu0 %v1037
  %v1181 = vpop.f32.mrf.mxu0
  %v1182 = vadd.f32 %v1081, %v1181
  %1183 = vmatmul.f32.gmra.mxu0 %v1039
  %v1184 = vpop.f32.mrf.mxu0
  %v1185 = vadd.f32 %v1081, %v1184
  %1186 = vmatmul.f32.gmra.mxu0 %v1041
  %v1187 = vpop.f32.mrf.mxu0
  %v1188 = vadd.f32 %v1081, %v1187
  %1189 = vmatmul.f32.gmra.mxu0 %v1043
  %v1190 = vpop.f32.mrf.mxu0
  %v1191 = vadd.f32 %v1081, %v1190
  %1192 = vmatmul.f32.gmra.mxu0 %v1045
  %v1193 = vpop.f32.mrf.mxu0
  %v1194 = vadd.f32 %v1081, %v1193
  %1195 = vdwg.mxu0
  %1196 = vmatpush.msra.mxu0 %v1078
  %1197 = vmatpush.msra.mxu0 %v1077
  %1198 = vmatpush.msra.mxu0 %v1076
  %1199 = vmatpush.msra.mxu0 %v1075
  %1200 = vmatpush.msra.mxu0 %v1074
  %1201 = vmatpush.msra.mxu0 %v1073
  %1202 = vmatpush.msra.mxu0 %v1072
  %1203 = vmatpush.msra.mxu0 %v1071
  %1204 = vmatpush.msra.mxu0 %v1070
  %1205 = vmatpush.msra.mxu0 %v1069
  %1206 = vmatpush.msra.mxu0 %v1068
  %1207 = vmatpush.msra.mxu0 %v1067
  %1208 = vmatpush.msra.mxu0 %v1066
  %1209 = vmatpush.msra.mxu0 %v1065
  %1210 = vmatpush.msra.mxu0 %v1064
  %1211 = vmatpush.msra.mxu0 %v1063
  %1212 = vmatmul.f32.gmra.mxu0 %v984
  %v1213 = vpop.f32.mrf.mxu0
  %v1214 = vadd.f32 %v1101, %v1213
  %1215 = vmatmul.f32.gmra.mxu0 %v986
  %v1216 = vpop.f32.mrf.mxu0
  %v1217 = vadd.f32 %v1104, %v1216
  %1218 = vmatmul.f32.gmra.mxu0 %v988
  %v1219 = vpop.f32.mrf.mxu0
  %v1220 = vadd.f32 %v1107, %v1219
  %1221 = vmatmul.f32.gmra.mxu0 %v990
  %v1222 = vpop.f32.mrf.mxu0
  %v1223 = vadd.f32 %v1110, %v1222
  %1224 = vmatmul.f32.gmra.mxu0 %v992
  %v1225 = vpop.f32.mrf.mxu0
  %v1226 = vadd.f32 %v1113, %v1225
  %1227 = vmatmul.f32.gmra.mxu0 %v994
  %v1228 = vpop.f32.mrf.mxu0
  %v1229 = vadd.f32 %v1116, %v1228
  %1230 = vmatmul.f32.gmra.mxu0 %v996
  %v1231 = vpop.f32.mrf.mxu0
  %v1232 = vadd.f32 %v1119, %v1231
  %1233 = vmatmul.f32.gmra.mxu0 %v998
  %v1234 = vpop.f32.mrf.mxu0
  %v1235 = vadd.f32 %v1122, %v1234
  %1236 = vmatmul.f32.gmra.mxu0 %v1000
  %v1237 = vpop.f32.mrf.mxu0
  %v1238 = vadd.f32 %v1125, %v1237
  %1239 = vmatmul.f32.gmra.mxu0 %v1002
  %v1240 = vpop.f32.mrf.mxu0
  %v1241 = vadd.f32 %v1128, %v1240
  %1242 = vmatmul.f32.gmra.mxu0 %v1004
  %v1243 = vpop.f32.mrf.mxu0
  %v1244 = vadd.f32 %v1131, %v1243
  %1245 = vmatmul.f32.gmra.mxu0 %v1006
  %v1246 = vpop.f32.mrf.mxu0
  %v1247 = vadd.f32 %v1134, %v1246
  %1248 = vmatmul.f32.gmra.mxu0 %v1008
  %v1249 = vpop.f32.mrf.mxu0
  %v1250 = vadd.f32 %v1137, %v1249
  %1251 = vmatmul.f32.gmra.mxu0 %v1010
  %v1252 = vpop.f32.mrf.mxu0
  %v1253 = vadd.f32 %v1140, %v1252
  %1254 = vmatmul.f32.gmra.mxu0 %v1012
  %v1255 = vpop.f32.mrf.mxu0
  %v1256 = vadd.f32 %v1143, %v1255
  %1257 = vmatmul.f32.gmra.mxu0 %v1014
  %v1258 = vpop.f32.mrf.mxu0
  %v1259 = vadd.f32 %v1146, %v1258
  %1260 = vmatmul.f32.gmra.mxu0 %v1016
  %v1261 = vpop.f32.mrf.mxu0
  %v1262 = vadd.f32 %v1149, %v1261
  %1263 = vmatmul.f32.gmra.mxu0 %v1018
  %v1264 = vpop.f32.mrf.mxu0
  %v1265 = vadd.f32 %v1152, %v1264
  %1266 = vmatmul.f32.gmra.mxu0 %v1020
  %v1267 = vpop.f32.mrf.mxu0
  %v1268 = vadd.f32 %v1155, %v1267
  %1269 = vmatmul.f32.gmra.mxu0 %v1022
  %v1270 = vpop.f32.mrf.mxu0
  %v1271 = vadd.f32 %v1158, %v1270
  %1272 = vmatmul.f32.gmra.mxu0 %v1024
  %v1273 = vpop.f32.mrf.mxu0
  %v1274 = vadd.f32 %v1161, %v1273
  %1275 = vmatmul.f32.gmra.mxu0 %v1026
  %v1276 = vpop.f32.mrf.mxu0
  %v1277 = vadd.f32 %v1164, %v1276
  %1278 = vmatmul.f32.gmra.mxu0 %v1028
  %v1279 = vpop.f32.mrf.mxu0
  %v1280 = vadd.f32 %v1167, %v1279
  %1281 = vmatmul.f32.gmra.mxu0 %v1030
  %v1282 = vpop.f32.mrf.mxu0
  %v1283 = vadd.f32 %v1170, %v1282
  %1284 = vmatmul.f32.gmra.mxu0 %v1032
  %v1285 = vpop.f32.mrf.mxu0
  %v1286 = vadd.f32 %v1173, %v1285
  %1287 = vmatmul.f32.gmra.mxu0 %v1034
  %v1288 = vpop.f32.mrf.mxu0
  %v1289 = vadd.f32 %v1176, %v1288
  %1290 = vmatmul.f32.gmra.mxu0 %v1036
  %v1291 = vpop.f32.mrf.mxu0
  %v1292 = vadd.f32 %v1179, %v1291
  %1293 = vmatmul.f32.gmra.mxu0 %v1038
  %v1294 = vpop.f32.mrf.mxu0
  %v1295 = vadd.f32 %v1182, %v1294
  %1296 = vmatmul.f32.gmra.mxu0 %v1040
  %v1297 = vpop.f32.mrf.mxu0
  %v1298 = vadd.f32 %v1185, %v1297
  %1299 = vmatmul.f32.gmra.mxu0 %v1042
  %v1300 = vpop.f32.mrf.mxu0
  %v1301 = vadd.f32 %v1188, %v1300
  %1302 = vmatmul.f32.gmra.mxu0 %v1044
  %v1303 = vpop.f32.mrf.mxu0
  %v1304 = vadd.f32 %v1191, %v1303
  %1305 = vmatmul.f32.gmra.mxu0 %v1046
  %v1306 = vpop.f32.mrf.mxu0
  %v1307 = vadd.f32 %v1194, %v1306
  %1308 = vdwg.mxu0
  %v1309 = vtanh.pop %v1214
  %v1310 = vtanh.pop %v1217
  %v1311 = vtanh.pop %v1220
  %v1312 = vtanh.pop %v1223
  %v1313 = vtanh.pop %v1226
  %v1314 = vtanh.pop %v1229
  %v1315 = vtanh.pop %v1232
  %v1316 = vtanh.pop %v1235
  %v1317 = vtanh.pop %v1238
  %v1318 = vtanh.pop %v1241
  %v1319 = vtanh.pop %v1244
  %v1320 = vtanh.pop %v1247
  %v1321 = vtanh.pop %v1250
  %v1322 = vtanh.pop %v1253
  %v1323 = vtanh.pop %v1256
  %v1324 = vtanh.pop %v1259
  %v1325 = vtanh.pop %v1262
  %v1326 = vtanh.pop %v1265
  %v1327 = vtanh.pop %v1268
  %v1328 = vtanh.pop %v1271
  %v1329 = vtanh.pop %v1274
  %v1330 = vtanh.pop %v1277
  %v1331 = vtanh.pop %v1280
  %v1332 = vtanh.pop %v1283
  %v1333 = vtanh.pop %v1286
  %v1334 = vtanh.pop %v1289
  %v1335 = vtanh.pop %v1292
  %v1336 = vtanh.pop %v1295
  %v1337 = vtanh.pop %v1298
  %v1338 = vtanh.pop %v1301
  %v1339 = vtanh.pop %v1304
  %v1340 = vtanh.pop %v1307
  %v1341 = vld [vmem:[%s7] sm:$0x1]
  %v1343 = vperm.slane %v1341, 0
  %v1345 = vmul.f32 %v1309, %v1343
  %v1346 = vmul.f32 %v1310, %v1343
  %v1347 = vmul.f32 %v1311, %v1343
  %v1348 = vmul.f32 %v1312, %v1343
  %v1349 = vmul.f32 %v1313, %v1343
  %v1350 = vmul.f32 %v1314, %v1343
  %v1351 = vmul.f32 %v1315, %v1343
  %v1352 = vmul.f32 %v1316, %v1343
  %v1353 = vmul.f32 %v1317, %v1343
  %v1354 = vmul.f32 %v1318, %v1343
  %v1355 = vmul.f32 %v1319, %v1343
  %v1356 = vmul.f32 %v1320, %v1343
  %v1357 = vmul.f32 %v1321, %v1343
  %v1358 = vmul.f32 %v1322, %v1343
  %v1359 = vmul.f32 %v1323, %v1343
  %v1360 = vmul.f32 %v1324, %v1343
  %v1361 = vmul.f32 %v1325, %v1343
  %v1362 = vmul.f32 %v1326, %v1343
  %v1363 = vmul.f32 %v1327, %v1343
  %v1364 = vmul.f32 %v1328, %v1343
  %v1365 = vmul.f32 %v1329, %v1343
  %v1366 = vmul.f32 %v1330, %v1343
  %v1367 = vmul.f32 %v1331, %v1343
  %v1368 = vmul.f32 %v1332, %v1343
  %v1369 = vmul.f32 %v1333, %v1343
  %v1370 = vmul.f32 %v1334, %v1343
  %v1371 = vmul.f32 %v1335, %v1343
  %v1372 = vmul.f32 %v1336, %v1343
  %v1373 = vmul.f32 %v1337, %v1343
  %v1374 = vmul.f32 %v1338, %v1343
  %v1375 = vmul.f32 %v1339, %v1343
  %v1376 = vmul.f32 %v1340, %v1343
  %v1377 = vld [vmem:[%s8] sm:$0x1]
  %v1379 = vperm.slane %v1377, 0
  %v1381 = vadd.f32 %v1345, %v1379
  %v1382 = vadd.f32 %v1346, %v1379
  %v1383 = vadd.f32 %v1347, %v1379
  %v1384 = vadd.f32 %v1348, %v1379
  %v1385 = vadd.f32 %v1349, %v1379
  %v1386 = vadd.f32 %v1350, %v1379
  %v1387 = vadd.f32 %v1351, %v1379
  %v1388 = vadd.f32 %v1352, %v1379
  %v1389 = vadd.f32 %v1353, %v1379
  %v1390 = vadd.f32 %v1354, %v1379
  %v1391 = vadd.f32 %v1355, %v1379
  %v1392 = vadd.f32 %v1356, %v1379
  %v1393 = vadd.f32 %v1357, %v1379
  %v1394 = vadd.f32 %v1358, %v1379
  %v1395 = vadd.f32 %v1359, %v1379
  %v1396 = vadd.f32 %v1360, %v1379
  %v1397 = vadd.f32 %v1361, %v1379
  %v1398 = vadd.f32 %v1362, %v1379
  %v1399 = vadd.f32 %v1363, %v1379
  %v1400 = vadd.f32 %v1364, %v1379
  %v1401 = vadd.f32 %v1365, %v1379
  %v1402 = vadd.f32 %v1366, %v1379
  %v1403 = vadd.f32 %v1367, %v1379
  %v1404 = vadd.f32 %v1368, %v1379
  %v1405 = vadd.f32 %v1369, %v1379
  %v1406 = vadd.f32 %v1370, %v1379
  %v1407 = vadd.f32 %v1371, %v1379
  %v1408 = vadd.f32 %v1372, %v1379
  %v1409 = vadd.f32 %v1373, %v1379
  %v1410 = vadd.f32 %v1374, %v1379
  %v1411 = vadd.f32 %v1375, %v1379
  %v1412 = vadd.f32 %v1376, %v1379
  %vm1413 = vcmask 31744
  %1414 = vst.msk [vmem:[%s9] sm:$0xff] %vm1413, %v1381
  %1415 = vst.msk [vmem:[%s9 + $0x8] sm:$0xff] %vm1413, %v1382
  %1416 = vst.msk [vmem:[%s9 + $0x10] sm:$0xff] %vm1413, %v1383
  %1417 = vst.msk [vmem:[%s9 + $0x18] sm:$0xff] %vm1413, %v1384
  %1418 = vst.msk [vmem:[%s9 + $0x20] sm:$0xff] %vm1413, %v1385
  %1419 = vst.msk [vmem:[%s9 + $0x28] sm:$0xff] %vm1413, %v1386
  %1420 = vst.msk [vmem:[%s9 + $0x30] sm:$0xff] %vm1413, %v1387
  %1421 = vst.msk [vmem:[%s9 + $0x38] sm:$0xff] %vm1413, %v1388
  %1422 = vst.msk [vmem:[%s9 + $0x40] sm:$0xff] %vm1413, %v1389
  %1423 = vst.msk [vmem:[%s9 + $0x48] sm:$0xff] %vm1413, %v1390
  %1424 = vst.msk [vmem:[%s9 + $0x50] sm:$0xff] %vm1413, %v1391
  %1425 = vst.msk [vmem:[%s9 + $0x58] sm:$0xff] %vm1413, %v1392
  %1426 = vst.msk [vmem:[%s9 + $0x60] sm:$0xff] %vm1413, %v1393
  %1427 = vst.msk [vmem:[%s9 + $0x68] sm:$0xff] %vm1413, %v1394
  %1428 = vst.msk [vmem:[%s9 + $0x70] sm:$0xff] %vm1413, %v1395
  %1429 = vst.msk [vmem:[%s9 + $0x78] sm:$0xff] %vm1413, %v1396
  %1430 = vst.msk [vmem:[%s9 + $0x80] sm:$0xff] %vm1413, %v1397
  %1431 = vst.msk [vmem:[%s9 + $0x88] sm:$0xff] %vm1413, %v1398
  %1432 = vst.msk [vmem:[%s9 + $0x90] sm:$0xff] %vm1413, %v1399
  %1433 = vst.msk [vmem:[%s9 + $0x98] sm:$0xff] %vm1413, %v1400
  %1434 = vst.msk [vmem:[%s9 + $0xa0] sm:$0xff] %vm1413, %v1401
  %1435 = vst.msk [vmem:[%s9 + $0xa8] sm:$0xff] %vm1413, %v1402
  %1436 = vst.msk [vmem:[%s9 + $0xb0] sm:$0xff] %vm1413, %v1403
  %1437 = vst.msk [vmem:[%s9 + $0xb8] sm:$0xff] %vm1413, %v1404
  %1438 = vst.msk [vmem:[%s9 + $0xc0] sm:$0xff] %vm1413, %v1405
  %1439 = vst.msk [vmem:[%s9 + $0xc8] sm:$0xff] %vm1413, %v1406
  %1440 = vst.msk [vmem:[%s9 + $0xd0] sm:$0xff] %vm1413, %v1407
  %1441 = vst.msk [vmem:[%s9 + $0xd8] sm:$0xff] %vm1413, %v1408
  %1442 = vst.msk [vmem:[%s9 + $0xe0] sm:$0xff] %vm1413, %v1409
  %1443 = vst.msk [vmem:[%s9 + $0xe8] sm:$0xff] %vm1413, %v1410
  %1444 = vst.msk [vmem:[%s9 + $0xf0] sm:$0xff] %vm1413, %v1411
  %1445 = vst.msk [vmem:[%s9 + $0xf8] sm:$0xff] %vm1413, %v1412
  // Predicated region
  $region38: #{actor_forward.1} parent=0 // pred_check
    _
  $region39: #{actor_forward.1} parent=0 // pred_check_branch
    %1447 = sbr.rel (0) target = $region41
  $region40: #{actor_forward.1} parent=0 // pred_region
    _
  $region41: #{actor_forward.1} parent=0 // pred_fallthru
    _
  // Predicated region
  $region42: #{actor_forward.1} parent=0 // pred_check
    _
  $region43: #{actor_forward.1} parent=0 // pred_check_branch
    %1449 = sbr.rel (0) target = $region45
  $region44: #{actor_forward.1} parent=0 // pred_region
    _
  $region45: #{actor_forward.1} parent=0 // pred_fallthru
    _

</llo_original>
